<compile_context>
chip_gen: v7x
topology: tpu7x:2x2x1
jax: 0.10.0
libtpu: 0.0.40
codegen_flags: <defaults>
</compile_context>

<pallas_src>
import functools

import numpy as np
import jax
import jax.numpy as jnp
from jax import lax
from jax.experimental import pallas as pl
from jax.experimental.pallas import tpu as pltpu


# ----------------------------------------------------------------------------
# Daubechies scaling (lowpass analysis) filters db1..db5
# ----------------------------------------------------------------------------
_DB_FILTERS = [
    # db1 (Haar)
    [0.7071067811865476, 0.7071067811865476],
    # db2
    [0.48296291314469025, 0.836516303737469, 0.22414386804185735, -0.12940952255092145],
    # db3
    [0.3326705529509569, 0.8068915093133388, 0.4598775021193313,
     -0.13501102001039084, -0.08544127388224149, 0.035226291882100656],
    # db4
    [0.23037781330885523, 0.7148465705525415, 0.6308807679295904, -0.02798376941698385,
     -0.18703481171888114, 0.030841381835986965, 0.032883011666982945, -0.010597401784997278],
    # db5
    [0.160102397974125, 0.6038292697974729, 0.7243085284385744, 0.13842814590110342,
     -0.24229488706619015, -0.03224486958502952, 0.07757149384006515,
     -0.006241490213011705, -0.012580751999015526, 0.003335725285001549],
]


def _dwt_matrix(h, length):
    """Orthogonal single-level periodic DWT matrix of size (length, length)."""
    h = np.asarray(h, dtype=np.float64)
    flen = len(h)
    g = np.array([((-1.0) ** n) * h[flen - 1 - n] for n in range(flen)])
    half = length // 2
    mat = np.zeros((length, length), dtype=np.float64)
    for i in range(half):
        for j in range(flen):
            col = (2 * i + j) % length
            mat[i, col] += h[j]          # lowpass rows
            mat[half + i, col] += g[j]   # highpass rows
    return mat.astype(np.float32)


def _mxu_width():
    """128 on v2..v5 class chips, 256 on v6e / v7x (and anything unknown)."""
    try:
        kind = jax.devices()[0].device_kind.lower()
    except Exception:
        return 128
    return 128 if any(t in kind for t in ("v2", "v3", "v4", "v5")) else 256


# ----------------------------------------------------------------------------
# Fused Pallas kernel: nearest upsample + 5 SR iterations x 5 wavelets, in-VMEM.
# ----------------------------------------------------------------------------
def _sr_fused_kernel(xin_ref, upr_ref, upct_ref, a_ref, atw_ref, btcat_ref, bvst_ref,
                     pre_ref, out_ref, *, lam, n_iter, n_wave, pw):
    # --- exact nearest-neighbour upsample via 0/1 selection matmuls (f32, exact) ---
    xin = xin_ref[0]                                                       # (G*h_in, pack*w_in) f32
    x0 = jnp.dot(upr_ref[...], xin, preferred_element_type=jnp.float32)    # (GH, pack*w_in)
    x0 = jnp.dot(x0, upct_ref[...], preferred_element_type=jnp.float32)    # (GH, pw)

    def one_iter(_, carry):
        _, x = carry
        xb = x.astype(jnp.bfloat16)
        # all 5 analysis column transforms in ONE wide matmul: X @ [B1^T|...|B5^T]
        s_cat = jnp.dot(xb, btcat_ref[...], preferred_element_type=jnp.float32)   # (GH, 5*pw)
        us = []
        for k in range(n_wave):
            sk = s_cat[:, k * pw:(k + 1) * pw].astype(jnp.bfloat16)
            # analysis row transform (block-diag kron(I_G, A_k))
            c = jnp.dot(a_ref[k], sk, preferred_element_type=jnp.float32)          # (GH, pw)
            # softshrink(c) - c == -clip(c, -lam, lam)
            r = (-jnp.clip(c, -lam, lam)).astype(jnp.bfloat16)
            # weighted synthesis row transform (w_k folded into kron(I_G, A_k^T))
            u = jnp.dot(atw_ref[k], r, preferred_element_type=jnp.float32)         # (GH, pw)
            us.append(u.astype(jnp.bfloat16))
        # 5 synthesis column transforms + weighted sum as ONE deep-K matmul
        u_cat = jnp.concatenate(us, axis=1)                                        # (GH, 5*pw)
        delta = jnp.dot(u_cat, bvst_ref[...], preferred_element_type=jnp.float32)  # (GH, pw)
        return (x, x + delta)

    pre, x = lax.fori_loop(0, n_iter, one_iter, (x0, x0))
    pre_ref[0] = pre.astype(pre_ref.dtype)
    out_ref[0] = x.astype(out_ref.dtype)


def _sr_fused(x_packed, up_r, up_ct, a_mats, atw_mats, bt_cat, b_vst, lam, n_iter):
    ng, gh_in, pw_in = x_packed.shape
    gh = up_r.shape[0]
    pw = up_ct.shape[1]
    nwave = a_mats.shape[0]

    kernel = functools.partial(_sr_fused_kernel, lam=lam, n_iter=n_iter,
                               n_wave=nwave, pw=pw)

    def const_spec(shape):
        nd = len(shape)
        idx = lambda g: (0,) * nd
        try:
            # constants: same block every grid step -> single buffer is enough
            return pl.BlockSpec(shape, idx, pipeline_mode=pl.Buffered(1))
        except Exception:
            return pl.BlockSpec(shape, idx)

    return pl.pallas_call(
        kernel,
        out_shape=(jax.ShapeDtypeStruct((ng, gh, pw), jnp.float32),   # pre (after 4 iters)
                   jax.ShapeDtypeStruct((ng, gh, pw), jnp.float32)),  # x   (after 5 iters)
        grid=(ng,),
        in_specs=[
            pl.BlockSpec((1, gh_in, pw_in), lambda g: (g, 0, 0)),     # packed small images
            const_spec((gh, gh_in)),                                  # kron(I_G, row-nearest)
            const_spec((pw_in, pw)),                                  # kron(I_pack, col-nearest)^T
            const_spec((nwave, gh, gh)),                              # kron(I_G, A_k)
            const_spec((nwave, gh, gh)),                              # w_k * kron(I_G, A_k^T)
            const_spec((pw, nwave * pw)),                             # [kron(I_p,B_k^T)] lane-concat
            const_spec((nwave * pw, pw)),                             # [kron(I_p,B_k)] row-stack
        ],
        out_specs=(pl.BlockSpec((1, gh, pw), lambda g: (g, 0, 0)),
                   pl.BlockSpec((1, gh, pw), lambda g: (g, 0, 0))),
        compiler_params=pltpu.CompilerParams(dimension_semantics=("parallel",)),
    )(x_packed, up_r, up_ct, a_mats, atw_mats, bt_cat, b_vst)


# ----------------------------------------------------------------------------
# SRModel forward
# ----------------------------------------------------------------------------
@functools.partial(jax.jit, static_argnames=("new_shape", "p_lambda", "p_beta"))
def sr_model_forward(s, weight_params, new_shape=(32, 32), p_lambda=0.3, p_beta=0.6):
    del p_lambda  # p1/p2 are computed in __init__ but never used in forward
    h, w = new_shape
    lam = float(1.0 / p_beta)          # Softshrink threshold of the reference module

    n, c, h_in, w_in = s.shape
    nc = n * c
    mw = _mxu_width()

    # ---- packing geometry: images packed along lanes (pack) and sublanes (gbat) ----
    if w <= 128 and 128 % w == 0:
        pack = 128 // w
        if mw >= 256 and 256 % w == 0 and nc >= 2 * (256 // w):
            pack = 256 // w            # fill the 256-wide MXU only if enough images exist
    elif w <= mw and mw % w == 0:
        pack = mw // w
    else:
        pack = 1
    groups = -(-nc // pack)
    gbat = min(mw // h, groups) if (h <= mw and mw % h == 0) else 1
    gbat = max(gbat, 1)
    ng = -(-groups // gbat)            # NOTE: on v7x an even ng >= 2 balances both TensorCores
    npad = ng * gbat * pack
    gh, pw = gbat * h, pack * w

    # ---- constant matrices (built with numpy at trace time) ----
    eg = np.eye(gbat, dtype=np.float32)
    ep = np.eye(pack, dtype=np.float32)

    # nearest-neighbour selection matrices (exact 0/1), folded with the packing kron
    rsel = np.zeros((h, h_in), np.float32)
    rsel[np.arange(h), (np.arange(h) * h_in) // h] = 1.0
    csel = np.zeros((w, w_in), np.float32)
    csel[np.arange(w), (np.arange(w) * w_in) // w] = 1.0
    up_r = jnp.asarray(np.kron(eg, rsel))           # (gh, gbat*h_in)  f32 (exact upsample)
    up_ct = jnp.asarray(np.kron(ep, csel.T))        # (pack*w_in, pw)  f32 (exact upsample)

    a_np = np.stack([_dwt_matrix(f, h) for f in _DB_FILTERS])    # (5, h, h)
    b_np = np.stack([_dwt_matrix(f, w) for f in _DB_FILTERS])    # (5, w, w)
    a_mats = jnp.asarray(np.stack([np.kron(eg, m) for m in a_np]),
                         dtype=jnp.bfloat16)                                      # (5, gh, gh)
    at_big = np.stack([np.kron(eg, m.T) for m in a_np])                            # (5, gh, gh)
    bt_cat = jnp.asarray(np.concatenate([np.kron(ep, m.T) for m in b_np], axis=1),
                         dtype=jnp.bfloat16)                                       # (pw, 5*pw)
    b_vst = jnp.asarray(np.concatenate([np.kron(ep, m) for m in b_np], axis=0),
                        dtype=jnp.bfloat16)                                        # (5*pw, pw)

    # normalized weights folded into the synthesis-side row matrices
    wn = (weight_params / jnp.sum(weight_params)).reshape(-1).astype(jnp.float32)
    atw_mats = (wn[:, None, None] * jnp.asarray(at_big)).astype(jnp.bfloat16)      # (5, gh, gh)

    # ---- pack the SMALL input images: (nc, h_in, w_in) -> (ng, gbat*h_in, pack*w_in) ----
    x_flat = s.astype(jnp.float32).reshape(nc, h_in, w_in)
    if npad != nc:
        x_flat = jnp.pad(x_flat, ((0, npad - nc), (0, 0), (0, 0)))
    x_packed = (x_flat.reshape(ng, gbat, pack, h_in, w_in)
                .transpose(0, 1, 3, 2, 4)
                .reshape(ng, gbat * h_in, pack * w_in))

    pre_p, out_p = _sr_fused(x_packed, up_r, up_ct, a_mats, atw_mats, bt_cat, b_vst,
                             lam, n_iter=5)

    def unpack(y):
        y = (y.reshape(ng, gbat, h, pack, w)
             .transpose(0, 1, 3, 2, 4)
             .reshape(npad, h, w))
        return y[:nc].reshape(n, c, h, w)

    return unpack(pre_p), unpack(out_p)


if __name__ == "__main__":
    key = jax.random.PRNGKey(0)
    k_in, k_w = jax.random.split(key)

    # small input; upsampled to new_shape=(32, 32) inside the kernel
    s = jax.random.normal(k_in, (2, 3, 16, 16), dtype=jnp.float32)
    # torch.rand((5, 1)) equivalent, deterministic
    weight_params = jax.random.uniform(k_w, (5, 1), dtype=jnp.float32)

    pre, x = sr_model_forward(s, weight_params, new_shape=(32, 32))
    jax.block_until_ready((pre, x))

    assert pre.shape == (2, 3, 32, 32) and x.shape == (2, 3, 32, 32)
    assert bool(jnp.all(jnp.isfinite(pre))) and bool(jnp.all(jnp.isfinite(x)))
    print("KERNEL_OK")
</pallas_src>

<mosaic_0001>
module attributes {stable_mosaic.version = 11 : i64} {
  func.func @_sr_fused_kernel(%arg0: i32, %arg1: memref<1x32x64xf32, #tpu.memory_space<vmem>>, %arg2: memref<64x32xf32, #tpu.memory_space<vmem>>, %arg3: memref<64x128xf32, #tpu.memory_space<vmem>>, %arg4: memref<5x64x64xbf16, #tpu.memory_space<vmem>>, %arg5: memref<5x64x64xbf16, #tpu.memory_space<vmem>>, %arg6: memref<128x640xbf16, #tpu.memory_space<vmem>>, %arg7: memref<640x128xbf16, #tpu.memory_space<vmem>>, %arg8: memref<1x64x128xf32, #tpu.memory_space<vmem>>, %arg9: memref<1x64x128xf32, #tpu.memory_space<vmem>>) attributes {dimension_semantics = [#tpu.dimension_semantics<parallel>], iteration_bounds = array<i64: 1>, scalar_prefetch = 0 : i64, scratch_operands = 0 : i64, tpu.core_type = #tpu.core_type<tc>, window_params = [{transform_indices = @transform_0, window_bounds = array<i64: 1, 32, 64>}, {pipeline_mode = #tpu.pipeline_mode<synchronous>, transform_indices = @transform_1, window_bounds = array<i64: 64, 32>}, {pipeline_mode = #tpu.pipeline_mode<synchronous>, transform_indices = @transform_2, window_bounds = array<i64: 64, 128>}, {pipeline_mode = #tpu.pipeline_mode<synchronous>, transform_indices = @transform_3, window_bounds = array<i64: 5, 64, 64>}, {pipeline_mode = #tpu.pipeline_mode<synchronous>, transform_indices = @transform_4, window_bounds = array<i64: 5, 64, 64>}, {pipeline_mode = #tpu.pipeline_mode<synchronous>, transform_indices = @transform_5, window_bounds = array<i64: 128, 640>}, {pipeline_mode = #tpu.pipeline_mode<synchronous>, transform_indices = @transform_6, window_bounds = array<i64: 640, 128>}, {transform_indices = @transform_7, window_bounds = array<i64: 1, 64, 128>}, {transform_indices = @transform_8, window_bounds = array<i64: 1, 64, 128>}]} {
    %c0 = arith.constant 0 : index
    %c0_0 = arith.constant 0 : index
    %c0_1 = arith.constant 0 : index
    %0 = vector.load %arg1[%c0, %c0_0, %c0_1] : memref<1x32x64xf32, #tpu.memory_space<vmem>>, vector<1x32x64xf32>
    %1 = vector.shape_cast %0 : vector<1x32x64xf32> to vector<32x64xf32>
    %c0_2 = arith.constant 0 : index
    %c0_3 = arith.constant 0 : index
    %2 = vector.load %arg2[%c0_2, %c0_3] : memref<64x32xf32, #tpu.memory_space<vmem>>, vector<64x32xf32>
    %cst = arith.constant dense<0.000000e+00> : vector<64x64xf32>
    %3 = tpu.matmul %2, %1, %cst {dimension_numbers = #tpu.dot_dimension_numbers<[1], [0], [0], [1], [0, 0, 1, 1], [], []>} : vector<64x32xf32>, vector<32x64xf32>, vector<64x64xf32> -> vector<64x64xf32>
    %c0_4 = arith.constant 0 : index
    %c0_5 = arith.constant 0 : index
    %4 = vector.load %arg3[%c0_4, %c0_5] : memref<64x128xf32, #tpu.memory_space<vmem>>, vector<64x128xf32>
    %cst_6 = arith.constant dense<0.000000e+00> : vector<64x128xf32>
    %5 = tpu.matmul %3, %4, %cst_6 {dimension_numbers = #tpu.dot_dimension_numbers<[1], [0], [0], [1], [0, 0, 1, 1], [], []>} : vector<64x64xf32>, vector<64x128xf32>, vector<64x128xf32> -> vector<64x128xf32>
    %c0_i32 = arith.constant 0 : i32
    %c5_i32 = arith.constant 5 : i32
    %6 = arith.addi %c0_i32, %c5_i32 : i32
    %c1_i32 = arith.constant 1 : i32
    %7:2 = scf.for %arg10 = %c0_i32 to %6 step %c1_i32 iter_args(%arg11 = %5, %arg12 = %5) -> (vector<64x128xf32>, vector<64x128xf32>)  : i32 {
      %14 = arith.truncf %arg12 : vector<64x128xf32> to vector<64x128xbf16>
      %c0_13 = arith.constant 0 : index
      %c0_14 = arith.constant 0 : index
      %15 = vector.load %arg6[%c0_13, %c0_14] : memref<128x640xbf16, #tpu.memory_space<vmem>>, vector<128x640xbf16>
      %cst_15 = arith.constant dense<0.000000e+00> : vector<64x640xf32>
      %16 = tpu.matmul %14, %15, %cst_15 {dimension_numbers = #tpu.dot_dimension_numbers<[1], [0], [0], [1], [0, 0, 1, 1], [], []>} : vector<64x128xbf16>, vector<128x640xbf16>, vector<64x640xf32> -> vector<64x640xf32>
      %17 = vector.extract_strided_slice %16 {offsets = [0, 0], sizes = [64, 128], strides = [1, 1]} : vector<64x640xf32> to vector<64x128xf32>
      %18 = arith.truncf %17 : vector<64x128xf32> to vector<64x128xbf16>
      %c0_16 = arith.constant 0 : index
      %c0_17 = arith.constant 0 : index
      %c0_18 = arith.constant 0 : index
      %19 = vector.load %arg4[%c0_16, %c0_17, %c0_18] : memref<5x64x64xbf16, #tpu.memory_space<vmem>>, vector<1x64x64xbf16>
      %20 = vector.shape_cast %19 : vector<1x64x64xbf16> to vector<64x64xbf16>
      %cst_19 = arith.constant dense<0.000000e+00> : vector<64x128xf32>
      %21 = tpu.matmul %20, %18, %cst_19 {dimension_numbers = #tpu.dot_dimension_numbers<[1], [0], [0], [1], [0, 0, 1, 1], [], []>} : vector<64x64xbf16>, vector<64x128xbf16>, vector<64x128xf32> -> vector<64x128xf32>
      %cst_20 = arith.constant -1.66666663 : f32
      %cst_21 = arith.constant 1.66666663 : f32
      %22 = vector.broadcast %cst_20 : f32 to vector<64x128xf32>
      %23 = arith.maximumf %22, %21 : vector<64x128xf32>
      %24 = vector.broadcast %cst_21 : f32 to vector<64x128xf32>
      %25 = arith.minimumf %24, %23 : vector<64x128xf32>
      %cst_22 = arith.constant 0.000000e+00 : f32
      %26 = vector.broadcast %cst_22 : f32 to vector<64x128xf32>
      %27 = arith.subf %26, %25 : vector<64x128xf32>
      %28 = arith.truncf %27 : vector<64x128xf32> to vector<64x128xbf16>
      %c0_23 = arith.constant 0 : index
      %c0_24 = arith.constant 0 : index
      %c0_25 = arith.constant 0 : index
      %29 = vector.load %arg5[%c0_23, %c0_24, %c0_25] : memref<5x64x64xbf16, #tpu.memory_space<vmem>>, vector<1x64x64xbf16>
      %30 = vector.shape_cast %29 : vector<1x64x64xbf16> to vector<64x64xbf16>
      %cst_26 = arith.constant dense<0.000000e+00> : vector<64x128xf32>
      %31 = tpu.matmul %30, %28, %cst_26 {dimension_numbers = #tpu.dot_dimension_numbers<[1], [0], [0], [1], [0, 0, 1, 1], [], []>} : vector<64x64xbf16>, vector<64x128xbf16>, vector<64x128xf32> -> vector<64x128xf32>
      %32 = arith.truncf %31 : vector<64x128xf32> to vector<64x128xbf16>
      %33 = vector.extract_strided_slice %16 {offsets = [0, 128], sizes = [64, 128], strides = [1, 1]} : vector<64x640xf32> to vector<64x128xf32>
      %34 = arith.truncf %33 : vector<64x128xf32> to vector<64x128xbf16>
      %c1 = arith.constant 1 : index
      %c0_27 = arith.constant 0 : index
      %c0_28 = arith.constant 0 : index
      %35 = vector.load %arg4[%c1, %c0_27, %c0_28] : memref<5x64x64xbf16, #tpu.memory_space<vmem>>, vector<1x64x64xbf16>
      %36 = vector.shape_cast %35 : vector<1x64x64xbf16> to vector<64x64xbf16>
      %cst_29 = arith.constant dense<0.000000e+00> : vector<64x128xf32>
      %37 = tpu.matmul %36, %34, %cst_29 {dimension_numbers = #tpu.dot_dimension_numbers<[1], [0], [0], [1], [0, 0, 1, 1], [], []>} : vector<64x64xbf16>, vector<64x128xbf16>, vector<64x128xf32> -> vector<64x128xf32>
      %cst_30 = arith.constant -1.66666663 : f32
      %cst_31 = arith.constant 1.66666663 : f32
      %38 = vector.broadcast %cst_30 : f32 to vector<64x128xf32>
      %39 = arith.maximumf %38, %37 : vector<64x128xf32>
      %40 = vector.broadcast %cst_31 : f32 to vector<64x128xf32>
      %41 = arith.minimumf %40, %39 : vector<64x128xf32>
      %cst_32 = arith.constant 0.000000e+00 : f32
      %42 = vector.broadcast %cst_32 : f32 to vector<64x128xf32>
      %43 = arith.subf %42, %41 : vector<64x128xf32>
      %44 = arith.truncf %43 : vector<64x128xf32> to vector<64x128xbf16>
      %c1_33 = arith.constant 1 : index
      %c0_34 = arith.constant 0 : index
      %c0_35 = arith.constant 0 : index
      %45 = vector.load %arg5[%c1_33, %c0_34, %c0_35] : memref<5x64x64xbf16, #tpu.memory_space<vmem>>, vector<1x64x64xbf16>
      %46 = vector.shape_cast %45 : vector<1x64x64xbf16> to vector<64x64xbf16>
      %cst_36 = arith.constant dense<0.000000e+00> : vector<64x128xf32>
      %47 = tpu.matmul %46, %44, %cst_36 {dimension_numbers = #tpu.dot_dimension_numbers<[1], [0], [0], [1], [0, 0, 1, 1], [], []>} : vector<64x64xbf16>, vector<64x128xbf16>, vector<64x128xf32> -> vector<64x128xf32>
      %48 = arith.truncf %47 : vector<64x128xf32> to vector<64x128xbf16>
      %49 = vector.extract_strided_slice %16 {offsets = [0, 256], sizes = [64, 128], strides = [1, 1]} : vector<64x640xf32> to vector<64x128xf32>
      %50 = arith.truncf %49 : vector<64x128xf32> to vector<64x128xbf16>
      %c2 = arith.constant 2 : index
      %c0_37 = arith.constant 0 : index
      %c0_38 = arith.constant 0 : index
      %51 = vector.load %arg4[%c2, %c0_37, %c0_38] : memref<5x64x64xbf16, #tpu.memory_space<vmem>>, vector<1x64x64xbf16>
      %52 = vector.shape_cast %51 : vector<1x64x64xbf16> to vector<64x64xbf16>
      %cst_39 = arith.constant dense<0.000000e+00> : vector<64x128xf32>
      %53 = tpu.matmul %52, %50, %cst_39 {dimension_numbers = #tpu.dot_dimension_numbers<[1], [0], [0], [1], [0, 0, 1, 1], [], []>} : vector<64x64xbf16>, vector<64x128xbf16>, vector<64x128xf32> -> vector<64x128xf32>
      %cst_40 = arith.constant -1.66666663 : f32
      %cst_41 = arith.constant 1.66666663 : f32
      %54 = vector.broadcast %cst_40 : f32 to vector<64x128xf32>
      %55 = arith.maximumf %54, %53 : vector<64x128xf32>
      %56 = vector.broadcast %cst_41 : f32 to vector<64x128xf32>
      %57 = arith.minimumf %56, %55 : vector<64x128xf32>
      %cst_42 = arith.constant 0.000000e+00 : f32
      %58 = vector.broadcast %cst_42 : f32 to vector<64x128xf32>
      %59 = arith.subf %58, %57 : vector<64x128xf32>
      %60 = arith.truncf %59 : vector<64x128xf32> to vector<64x128xbf16>
      %c2_43 = arith.constant 2 : index
      %c0_44 = arith.constant 0 : index
      %c0_45 = arith.constant 0 : index
      %61 = vector.load %arg5[%c2_43, %c0_44, %c0_45] : memref<5x64x64xbf16, #tpu.memory_space<vmem>>, vector<1x64x64xbf16>
      %62 = vector.shape_cast %61 : vector<1x64x64xbf16> to vector<64x64xbf16>
      %cst_46 = arith.constant dense<0.000000e+00> : vector<64x128xf32>
      %63 = tpu.matmul %62, %60, %cst_46 {dimension_numbers = #tpu.dot_dimension_numbers<[1], [0], [0], [1], [0, 0, 1, 1], [], []>} : vector<64x64xbf16>, vector<64x128xbf16>, vector<64x128xf32> -> vector<64x128xf32>
      %64 = arith.truncf %63 : vector<64x128xf32> to vector<64x128xbf16>
      %65 = vector.extract_strided_slice %16 {offsets = [0, 384], sizes = [64, 128], strides = [1, 1]} : vector<64x640xf32> to vector<64x128xf32>
      %66 = arith.truncf %65 : vector<64x128xf32> to vector<64x128xbf16>
      %c3 = arith.constant 3 : index
      %c0_47 = arith.constant 0 : index
      %c0_48 = arith.constant 0 : index
      %67 = vector.load %arg4[%c3, %c0_47, %c0_48] : memref<5x64x64xbf16, #tpu.memory_space<vmem>>, vector<1x64x64xbf16>
      %68 = vector.shape_cast %67 : vector<1x64x64xbf16> to vector<64x64xbf16>
      %cst_49 = arith.constant dense<0.000000e+00> : vector<64x128xf32>
      %69 = tpu.matmul %68, %66, %cst_49 {dimension_numbers = #tpu.dot_dimension_numbers<[1], [0], [0], [1], [0, 0, 1, 1], [], []>} : vector<64x64xbf16>, vector<64x128xbf16>, vector<64x128xf32> -> vector<64x128xf32>
      %cst_50 = arith.constant -1.66666663 : f32
      %cst_51 = arith.constant 1.66666663 : f32
      %70 = vector.broadcast %cst_50 : f32 to vector<64x128xf32>
      %71 = arith.maximumf %70, %69 : vector<64x128xf32>
      %72 = vector.broadcast %cst_51 : f32 to vector<64x128xf32>
      %73 = arith.minimumf %72, %71 : vector<64x128xf32>
      %cst_52 = arith.constant 0.000000e+00 : f32
      %74 = vector.broadcast %cst_52 : f32 to vector<64x128xf32>
      %75 = arith.subf %74, %73 : vector<64x128xf32>
      %76 = arith.truncf %75 : vector<64x128xf32> to vector<64x128xbf16>
      %c3_53 = arith.constant 3 : index
      %c0_54 = arith.constant 0 : index
      %c0_55 = arith.constant 0 : index
      %77 = vector.load %arg5[%c3_53, %c0_54, %c0_55] : memref<5x64x64xbf16, #tpu.memory_space<vmem>>, vector<1x64x64xbf16>
      %78 = vector.shape_cast %77 : vector<1x64x64xbf16> to vector<64x64xbf16>
      %cst_56 = arith.constant dense<0.000000e+00> : vector<64x128xf32>
      %79 = tpu.matmul %78, %76, %cst_56 {dimension_numbers = #tpu.dot_dimension_numbers<[1], [0], [0], [1], [0, 0, 1, 1], [], []>} : vector<64x64xbf16>, vector<64x128xbf16>, vector<64x128xf32> -> vector<64x128xf32>
      %80 = arith.truncf %79 : vector<64x128xf32> to vector<64x128xbf16>
      %81 = vector.extract_strided_slice %16 {offsets = [0, 512], sizes = [64, 128], strides = [1, 1]} : vector<64x640xf32> to vector<64x128xf32>
      %82 = arith.truncf %81 : vector<64x128xf32> to vector<64x128xbf16>
      %c4 = arith.constant 4 : index
      %c0_57 = arith.constant 0 : index
      %c0_58 = arith.constant 0 : index
      %83 = vector.load %arg4[%c4, %c0_57, %c0_58] : memref<5x64x64xbf16, #tpu.memory_space<vmem>>, vector<1x64x64xbf16>
      %84 = vector.shape_cast %83 : vector<1x64x64xbf16> to vector<64x64xbf16>
      %cst_59 = arith.constant dense<0.000000e+00> : vector<64x128xf32>
      %85 = tpu.matmul %84, %82, %cst_59 {dimension_numbers = #tpu.dot_dimension_numbers<[1], [0], [0], [1], [0, 0, 1, 1], [], []>} : vector<64x64xbf16>, vector<64x128xbf16>, vector<64x128xf32> -> vector<64x128xf32>
      %cst_60 = arith.constant -1.66666663 : f32
      %cst_61 = arith.constant 1.66666663 : f32
      %86 = vector.broadcast %cst_60 : f32 to vector<64x128xf32>
      %87 = arith.maximumf %86, %85 : vector<64x128xf32>
      %88 = vector.broadcast %cst_61 : f32 to vector<64x128xf32>
      %89 = arith.minimumf %88, %87 : vector<64x128xf32>
      %cst_62 = arith.constant 0.000000e+00 : f32
      %90 = vector.broadcast %cst_62 : f32 to vector<64x128xf32>
      %91 = arith.subf %90, %89 : vector<64x128xf32>
      %92 = arith.truncf %91 : vector<64x128xf32> to vector<64x128xbf16>
      %c4_63 = arith.constant 4 : index
      %c0_64 = arith.constant 0 : index
      %c0_65 = arith.constant 0 : index
      %93 = vector.load %arg5[%c4_63, %c0_64, %c0_65] : memref<5x64x64xbf16, #tpu.memory_space<vmem>>, vector<1x64x64xbf16>
      %94 = vector.shape_cast %93 : vector<1x64x64xbf16> to vector<64x64xbf16>
      %cst_66 = arith.constant dense<0.000000e+00> : vector<64x128xf32>
      %95 = tpu.matmul %94, %92, %cst_66 {dimension_numbers = #tpu.dot_dimension_numbers<[1], [0], [0], [1], [0, 0, 1, 1], [], []>} : vector<64x64xbf16>, vector<64x128xbf16>, vector<64x128xf32> -> vector<64x128xf32>
      %96 = arith.truncf %95 : vector<64x128xf32> to vector<64x128xbf16>
      %97 = tpu.concatenate %32, %48, %64, %80, %96 in 1 : vector<64x128xbf16>, vector<64x128xbf16>, vector<64x128xbf16>, vector<64x128xbf16>, vector<64x128xbf16> -> vector<64x640xbf16>
      %c0_67 = arith.constant 0 : index
      %c0_68 = arith.constant 0 : index
      %98 = vector.load %arg7[%c0_67, %c0_68] : memref<640x128xbf16, #tpu.memory_space<vmem>>, vector<640x128xbf16>
      %cst_69 = arith.constant dense<0.000000e+00> : vector<64x128xf32>
      %99 = tpu.matmul %97, %98, %cst_69 {dimension_numbers = #tpu.dot_dimension_numbers<[1], [0], [0], [1], [0, 0, 1, 1], [], []>} : vector<64x640xbf16>, vector<640x128xbf16>, vector<64x128xf32> -> vector<64x128xf32>
      %100 = arith.addf %arg12, %99 : vector<64x128xf32>
      scf.yield %arg12, %100 : vector<64x128xf32>, vector<64x128xf32>
    }
    %c0_7 = arith.constant 0 : index
    %c0_8 = arith.constant 0 : index
    %c0_9 = arith.constant 0 : index
    %8 = vector.load %arg8[%c0_7, %c0_8, %c0_9] : memref<1x64x128xf32, #tpu.memory_space<vmem>>, vector<1x64x128xf32>
    %9 = vector.shape_cast %8 : vector<1x64x128xf32> to vector<64x128xf32>
    %10 = vector.shape_cast %7#0 : vector<64x128xf32> to vector<1x64x128xf32>
    tpu.vector_store %arg8[%c0_7, %c0_8, %c0_9], %10 {strides = array<i32>} : memref<1x64x128xf32, #tpu.memory_space<vmem>>, vector<1x64x128xf32>,
    %c0_10 = arith.constant 0 : index
    %c0_11 = arith.constant 0 : index
    %c0_12 = arith.constant 0 : index
    %11 = vector.load %arg9[%c0_10, %c0_11, %c0_12] : memref<1x64x128xf32, #tpu.memory_space<vmem>>, vector<1x64x128xf32>
    %12 = vector.shape_cast %11 : vector<1x64x128xf32> to vector<64x128xf32>
    %13 = vector.shape_cast %7#1 : vector<64x128xf32> to vector<1x64x128xf32>
    tpu.vector_store %arg9[%c0_10, %c0_11, %c0_12], %13 {strides = array<i32>} : memref<1x64x128xf32, #tpu.memory_space<vmem>>, vector<1x64x128xf32>,
    return
  }
  func.func @transform_0(%arg0: i32) -> (i32, i32, i32) {
    %c0_i32 = arith.constant 0 : i32
    %c0_i32_0 = arith.constant 0 : i32
    %c0_i32_1 = arith.constant 0 : i32
    return %arg0, %c0_i32, %c0_i32_0 : i32, i32, i32
  }
  func.func @transform_1(%arg0: i32) -> (i32, i32) {
    %c0_i32 = arith.constant 0 : i32
    %c0_i32_0 = arith.constant 0 : i32
    %c0_i32_1 = arith.constant 0 : i32
    return %c0_i32, %c0_i32_0 : i32, i32
  }
  func.func @transform_2(%arg0: i32) -> (i32, i32) {
    %c0_i32 = arith.constant 0 : i32
    %c0_i32_0 = arith.constant 0 : i32
    %c0_i32_1 = arith.constant 0 : i32
    return %c0_i32, %c0_i32_0 : i32, i32
  }
  func.func @transform_3(%arg0: i32) -> (i32, i32, i32) {
    %c0_i32 = arith.constant 0 : i32
    %c0_i32_0 = arith.constant 0 : i32
    %c0_i32_1 = arith.constant 0 : i32
    %c0_i32_2 = arith.constant 0 : i32
    return %c0_i32, %c0_i32_0, %c0_i32_1 : i32, i32, i32
  }
  func.func @transform_4(%arg0: i32) -> (i32, i32, i32) {
    %c0_i32 = arith.constant 0 : i32
    %c0_i32_0 = arith.constant 0 : i32
    %c0_i32_1 = arith.constant 0 : i32
    %c0_i32_2 = arith.constant 0 : i32
    return %c0_i32, %c0_i32_0, %c0_i32_1 : i32, i32, i32
  }
  func.func @transform_5(%arg0: i32) -> (i32, i32) {
    %c0_i32 = arith.constant 0 : i32
    %c0_i32_0 = arith.constant 0 : i32
    %c0_i32_1 = arith.constant 0 : i32
    return %c0_i32, %c0_i32_0 : i32, i32
  }
  func.func @transform_6(%arg0: i32) -> (i32, i32) {
    %c0_i32 = arith.constant 0 : i32
    %c0_i32_0 = arith.constant 0 : i32
    %c0_i32_1 = arith.constant 0 : i32
    return %c0_i32, %c0_i32_0 : i32, i32
  }
  func.func @transform_7(%arg0: i32) -> (i32, i32, i32) {
    %c0_i32 = arith.constant 0 : i32
    %c0_i32_0 = arith.constant 0 : i32
    %c0_i32_1 = arith.constant 0 : i32
    return %arg0, %c0_i32, %c0_i32_0 : i32, i32, i32
  }
  func.func @transform_8(%arg0: i32) -> (i32, i32, i32) {
    %c0_i32 = arith.constant 0 : i32
    %c0_i32_0 = arith.constant 0 : i32
    %c0_i32_1 = arith.constant 0 : i32
    return %arg0, %c0_i32, %c0_i32_0 : i32, i32, i32
  }
}

</mosaic_0001>

<llo_original>
// kernel: sr_model_forward.1
$region0: #{sr_model_forward.1}
  #allocation0 [shape = 'u32[]', space=smem, size = 0x4, offset = 0x4, fixed_abs, tag = 'smem constant byte address 0x4 - core index']
  #allocation1 [shape = 'u32[144,128]{1,0:T(1,128)}', space=vmem, size = 0x12000, scoped, tag = 'internal scratch']
  %s0 = inlined_call_operand.vmem [shape: f32[1,32,64], index: 0, kind: input, shape index: {}]
  %s1 = inlined_call_operand.vmem [shape: f32[64,32], index: 1, kind: input, shape index: {}]
  %s2 = inlined_call_operand.vmem [shape: f32[64,128], index: 2, kind: input, shape index: {}]
  %s3 = inlined_call_operand.vmem [shape: bf16[5,64,64], index: 3, kind: input, shape index: {}]
  %s4 = inlined_call_operand.vmem [shape: bf16[5,64,64], index: 4, kind: input, shape index: {}]
  %s5 = inlined_call_operand.vmem [shape: bf16[128,640], index: 5, kind: input, shape index: {}]
  %s6 = inlined_call_operand.vmem [shape: bf16[640,128], index: 6, kind: input, shape index: {}]
  %s7 = inlined_call_operand.vmem [shape: f32[1,64,128], index: 7, kind: output, shape index: {0}]
  %s8 = inlined_call_operand.vmem [shape: f32[1,64,128], index: 8, kind: output, shape index: {1}]
  %9 = xla_tuple %s7, %s8
  %s10 = sld [smem:[#allocation0]]
  $region53: #{sr_model_forward.1} parent=0
    _
  %s12 = ssub.s32 1, %s10
  %s13 = scalar_select 0, %s12, %s10
  // Predicated region
  $region2: #{sr_model_forward.1} parent=0 // pred_check
    _
  $region3: #{sr_model_forward.1} parent=0 // pred_check_branch
    %15 = sbr.rel (0) target = $region5
  $region4: #{sr_model_forward.1} parent=0 // pred_region
    _
  $region5: #{sr_model_forward.1} parent=0 // pred_fallthru
    _
  // Predicated region
  $region6: #{sr_model_forward.1} parent=0 // pred_check
    _
  $region7: #{sr_model_forward.1} parent=0 // pred_check_branch
    %17 = sbr.rel (0) target = $region9
  $region8: #{sr_model_forward.1} parent=0 // pred_region
    _
  $region9: #{sr_model_forward.1} parent=0 // pred_fallthru
    _
  // Predicated region
  $region10: #{sr_model_forward.1} parent=0 // pred_check
    _
  $region11: #{sr_model_forward.1} parent=0 // pred_check_branch
    %19 = sbr.rel (0) target = $region13
  $region12: #{sr_model_forward.1} parent=0 // pred_region
    _
  $region13: #{sr_model_forward.1} parent=0 // pred_fallthru
    _
  // Predicated region
  $region14: #{sr_model_forward.1} parent=0 // pred_check
    _
  $region15: #{sr_model_forward.1} parent=0 // pred_check_branch
    %21 = sbr.rel (0) target = $region17
  $region16: #{sr_model_forward.1} parent=0 // pred_region
    _
  $region17: #{sr_model_forward.1} parent=0 // pred_fallthru
    _
  // Predicated region
  $region18: #{sr_model_forward.1} parent=0 // pred_check
    _
  $region19: #{sr_model_forward.1} parent=0 // pred_check_branch
    %23 = sbr.rel (0) target = $region21
  $region20: #{sr_model_forward.1} parent=0 // pred_region
    _
  $region21: #{sr_model_forward.1} parent=0 // pred_fallthru
    _
  // Predicated region
  $region22: #{sr_model_forward.1} parent=0 // pred_check
    _
  $region23: #{sr_model_forward.1} parent=0 // pred_check_branch
    %25 = sbr.rel (0) target = $region25
  $region24: #{sr_model_forward.1} parent=0 // pred_region
    _
  $region25: #{sr_model_forward.1} parent=0 // pred_fallthru
    _
  // Predicated region
  $region26: #{sr_model_forward.1} parent=0 // pred_check
    _
  $region27: #{sr_model_forward.1} parent=0 // pred_check_branch
    %27 = sbr.rel (0) target = $region29
  $region28: #{sr_model_forward.1} parent=0 // pred_region
    _
  $region29: #{sr_model_forward.1} parent=0 // pred_fallthru
    _
  %v29 = vld [vmem:[%s0] sm:$0xff]
  %v30 = vld [vmem:[%s0 + $0x8] sm:$0xff]
  %v31 = vld [vmem:[%s0 + $0x10] sm:$0xff]
  %v32 = vld [vmem:[%s0 + $0x18] sm:$0xff]
  %v33 = vld [vmem:[%s1] sm:$0xff]
  %v34 = vld [vmem:[%s1 + $0x8] sm:$0xff]
  %v35 = vld [vmem:[%s1 + $0x10] sm:$0xff]
  %v36 = vld [vmem:[%s1 + $0x18] sm:$0xff]
  %v37 = vld [vmem:[%s1 + $0x20] sm:$0xff]
  %v38 = vld [vmem:[%s1 + $0x28] sm:$0xff]
  %v39 = vld [vmem:[%s1 + $0x30] sm:$0xff]
  %v40 = vld [vmem:[%s1 + $0x38] sm:$0xff]
  %vm41 = vcmask 261120
  %v43 = vsel %vm41, %v33, 0
  %v46 = vsel %vm41, %v34, 0
  %v49 = vsel %vm41, %v35, 0
  %v52 = vsel %vm41, %v36, 0
  %v55 = vsel %vm41, %v37, 0
  %v58 = vsel %vm41, %v38, 0
  %v61 = vsel %vm41, %v39, 0
  %v64 = vsel %vm41, %v40, 0
  %66 = vmatprep.subr.mxu0 0.0
  %67 = vmatpush1.msra.mxu0 %v29
  %68 = vmatprep.subr.mxu0 0.0
  %69 = vmatpush1.msra.mxu0 %v30
  %70 = vmatprep.subr.mxu0 0.0
  %71 = vmatpush1.msra.mxu0 %v31
  %72 = vmatprep.subr.mxu0 0.0
  %73 = vmatpush1.msra.mxu0 %v32
  %74 = vmatprep.subr.mxu0 0.0
  %75 = vmatpush1.msra.mxu0 0.0
  %76 = vmatprep.subr.mxu0 0.0
  %77 = vmatpush1.msra.mxu0 0.0
  %78 = vmatprep.subr.mxu0 0.0
  %79 = vmatpush1.msra.mxu0 0.0
  %80 = vmatprep.subr.mxu0 0.0
  %81 = vmatpush1.msra.mxu0 0.0
  %82 = vmatprep.subr.mxu0 0.0
  %83 = vmatpush1.msra.mxu0 0.0
  %84 = vmatprep.subr.mxu0 0.0
  %85 = vmatpush1.msra.mxu0 0.0
  %86 = vmatprep.subr.mxu0 0.0
  %87 = vmatpush1.msra.mxu0 0.0
  %88 = vmatprep.subr.mxu0 0.0
  %89 = vmatpush1.msra.mxu0 0.0
  %90 = vmatprep.subr.mxu0 0.0
  %91 = vmatpush1.msra.mxu0 0.0
  %92 = vmatprep.subr.mxu0 0.0
  %93 = vmatpush1.msra.mxu0 0.0
  %94 = vmatprep.subr.mxu0 0.0
  %95 = vmatpush1.msra.mxu0 0.0
  %96 = vmatprep.subr.mxu0 0.0
  %97 = vmatpush1.msra.mxu0 0.0
  %98 = vmatprep.subr.mxu0 0.0
  %99 = vmatpush1.msra.mxu0 0.0
  %100 = vmatprep.subr.mxu0 0.0
  %101 = vmatpush1.msra.mxu0 0.0
  %102 = vmatprep.subr.mxu0 0.0
  %103 = vmatpush1.msra.mxu0 0.0
  %104 = vmatprep.subr.mxu0 0.0
  %105 = vmatpush1.msra.mxu0 0.0
  %106 = vmatprep.subr.mxu0 0.0
  %107 = vmatpush1.msra.mxu0 0.0
  %108 = vmatprep.subr.mxu0 0.0
  %109 = vmatpush1.msra.mxu0 0.0
  %110 = vmatprep.subr.mxu0 0.0
  %111 = vmatpush1.msra.mxu0 0.0
  %112 = vmatprep.subr.mxu0 0.0
  %113 = vmatpush1.msra.mxu0 0.0
  %114 = vmatprep.subr.mxu0 0.0
  %115 = vmatpush1.msra.mxu0 0.0
  %116 = vmatprep.subr.mxu0 0.0
  %117 = vmatpush1.msra.mxu0 0.0
  %118 = vmatprep.subr.mxu0 0.0
  %119 = vmatpush1.msra.mxu0 0.0
  %120 = vmatprep.subr.mxu0 0.0
  %121 = vmatpush1.msra.mxu0 0.0
  %122 = vmatprep.subr.mxu0 0.0
  %123 = vmatpush1.msra.mxu0 0.0
  %124 = vmatprep.subr.mxu0 0.0
  %125 = vmatpush1.msra.mxu0 0.0
  %126 = vmatprep.subr.mxu0 0.0
  %127 = vmatpush1.msra.mxu0 0.0
  %128 = vmatprep.subr.mxu0 0.0
  %129 = vmatpush1.msra.mxu0 0.0
  %130 = vmatprep.mubr.f32.mxu0 0.0
  %131 = vmatmul.mubr.f32.gmra.mrb[0].mxu0 %v43
  %v132 = vpop.f32.mrb[0].mxu0
  %v133 = vadd.f32 0.0, %v132
  %v134 = vpop.f32.mrb[0].mxu0
  %135 = vmatprep.mubr.f32.mxu0 0.0
  %136 = vmatmul.mubr.f32.gmra.mrb[0].mxu0 %v46
  %v137 = vpop.f32.mrb[0].mxu0
  %v138 = vadd.f32 0.0, %v137
  %v139 = vpop.f32.mrb[0].mxu0
  %140 = vmatprep.mubr.f32.mxu0 0.0
  %141 = vmatmul.mubr.f32.gmra.mrb[0].mxu0 %v49
  %v142 = vpop.f32.mrb[0].mxu0
  %v143 = vadd.f32 0.0, %v142
  %v144 = vpop.f32.mrb[0].mxu0
  %145 = vmatprep.mubr.f32.mxu0 0.0
  %146 = vmatmul.mubr.f32.gmra.mrb[0].mxu0 %v52
  %v147 = vpop.f32.mrb[0].mxu0
  %v148 = vadd.f32 0.0, %v147
  %v149 = vpop.f32.mrb[0].mxu0
  %150 = vmatprep.mubr.f32.mxu0 0.0
  %151 = vmatmul.mubr.f32.gmra.mrb[0].mxu0 %v55
  %v152 = vpop.f32.mrb[0].mxu0
  %v153 = vadd.f32 0.0, %v152
  %v154 = vpop.f32.mrb[0].mxu0
  %155 = vmatprep.mubr.f32.mxu0 0.0
  %156 = vmatmul.mubr.f32.gmra.mrb[0].mxu0 %v58
  %v157 = vpop.f32.mrb[0].mxu0
  %v158 = vadd.f32 0.0, %v157
  %v159 = vpop.f32.mrb[0].mxu0
  %160 = vmatprep.mubr.f32.mxu0 0.0
  %161 = vmatmul.mubr.f32.gmra.mrb[0].mxu0 %v61
  %v162 = vpop.f32.mrb[0].mxu0
  %v163 = vadd.f32 0.0, %v162
  %v164 = vpop.f32.mrb[0].mxu0
  %165 = vmatprep.mubr.f32.mxu0 0.0
  %166 = vmatmul.mubr.f32.gmra.mrb[0].mxu0 %v64
  %v167 = vpop.f32.mrb[0].mxu0
  %v168 = vadd.f32 0.0, %v167
  %v169 = vpop.f32.mrb[0].mxu0
  %170 = vdwg.mxu0
  %v171 = vld [vmem:[%s2] sm:$0xff]
  %v172 = vld [vmem:[%s2 + $0x8] sm:$0xff]
  %v173 = vld [vmem:[%s2 + $0x10] sm:$0xff]
  %v174 = vld [vmem:[%s2 + $0x18] sm:$0xff]
  %v175 = vld [vmem:[%s2 + $0x20] sm:$0xff]
  %v176 = vld [vmem:[%s2 + $0x28] sm:$0xff]
  %v177 = vld [vmem:[%s2 + $0x30] sm:$0xff]
  %v178 = vld [vmem:[%s2 + $0x38] sm:$0xff]
  %vm179 = vcmask 523264
  %v181 = vsel %vm179, %v133, 0
  %v184 = vsel %vm179, %v138, 0
  %v187 = vsel %vm179, %v143, 0
  %v190 = vsel %vm179, %v148, 0
  %v193 = vsel %vm179, %v153, 0
  %v196 = vsel %vm179, %v158, 0
  %v199 = vsel %vm179, %v163, 0
  %v202 = vsel %vm179, %v168, 0
  %204 = vmatprep.subr.mxu0 0.0
  %205 = vmatpush1.msra.mxu0 %v171
  %206 = vmatprep.subr.mxu0 0.0
  %207 = vmatpush1.msra.mxu0 %v172
  %208 = vmatprep.subr.mxu0 0.0
  %209 = vmatpush1.msra.mxu0 %v173
  %210 = vmatprep.subr.mxu0 0.0
  %211 = vmatpush1.msra.mxu0 %v174
  %212 = vmatprep.subr.mxu0 0.0
  %213 = vmatpush1.msra.mxu0 %v175
  %214 = vmatprep.subr.mxu0 0.0
  %215 = vmatpush1.msra.mxu0 %v176
  %216 = vmatprep.subr.mxu0 0.0
  %217 = vmatpush1.msra.mxu0 %v177
  %218 = vmatprep.subr.mxu0 0.0
  %219 = vmatpush1.msra.mxu0 %v178
  %220 = vmatprep.subr.mxu0 0.0
  %221 = vmatpush1.msra.mxu0 0.0
  %222 = vmatprep.subr.mxu0 0.0
  %223 = vmatpush1.msra.mxu0 0.0
  %224 = vmatprep.subr.mxu0 0.0
  %225 = vmatpush1.msra.mxu0 0.0
  %226 = vmatprep.subr.mxu0 0.0
  %227 = vmatpush1.msra.mxu0 0.0
  %228 = vmatprep.subr.mxu0 0.0
  %229 = vmatpush1.msra.mxu0 0.0
  %230 = vmatprep.subr.mxu0 0.0
  %231 = vmatpush1.msra.mxu0 0.0
  %232 = vmatprep.subr.mxu0 0.0
  %233 = vmatpush1.msra.mxu0 0.0
  %234 = vmatprep.subr.mxu0 0.0
  %235 = vmatpush1.msra.mxu0 0.0
  %236 = vmatprep.subr.mxu0 0.0
  %237 = vmatpush1.msra.mxu0 0.0
  %238 = vmatprep.subr.mxu0 0.0
  %239 = vmatpush1.msra.mxu0 0.0
  %240 = vmatprep.subr.mxu0 0.0
  %241 = vmatpush1.msra.mxu0 0.0
  %242 = vmatprep.subr.mxu0 0.0
  %243 = vmatpush1.msra.mxu0 0.0
  %244 = vmatprep.subr.mxu0 0.0
  %245 = vmatpush1.msra.mxu0 0.0
  %246 = vmatprep.subr.mxu0 0.0
  %247 = vmatpush1.msra.mxu0 0.0
  %248 = vmatprep.subr.mxu0 0.0
  %249 = vmatpush1.msra.mxu0 0.0
  %250 = vmatprep.subr.mxu0 0.0
  %251 = vmatpush1.msra.mxu0 0.0
  %252 = vmatprep.subr.mxu0 0.0
  %253 = vmatpush1.msra.mxu0 0.0
  %254 = vmatprep.subr.mxu0 0.0
  %255 = vmatpush1.msra.mxu0 0.0
  %256 = vmatprep.subr.mxu0 0.0
  %257 = vmatpush1.msra.mxu0 0.0
  %258 = vmatprep.subr.mxu0 0.0
  %259 = vmatpush1.msra.mxu0 0.0
  %260 = vmatprep.subr.mxu0 0.0
  %261 = vmatpush1.msra.mxu0 0.0
  %262 = vmatprep.subr.mxu0 0.0
  %263 = vmatpush1.msra.mxu0 0.0
  %264 = vmatprep.subr.mxu0 0.0
  %265 = vmatpush1.msra.mxu0 0.0
  %266 = vmatprep.subr.mxu0 0.0
  %267 = vmatpush1.msra.mxu0 0.0
  %268 = vmatprep.mubr.f32.mxu0 0.0
  %269 = vmatmul.mubr.f32.gmra.mrb[0].mxu0 %v181
  %v270 = vpop.f32.mrb[0].mxu0
  %v271 = vadd.f32 0.0, %v270
  %v272 = vpop.f32.mrb[0].mxu0
  %273 = vmatprep.mubr.f32.mxu0 0.0
  %274 = vmatmul.mubr.f32.gmra.mrb[0].mxu0 %v184
  %v275 = vpop.f32.mrb[0].mxu0
  %v276 = vadd.f32 0.0, %v275
  %v277 = vpop.f32.mrb[0].mxu0
  %278 = vmatprep.mubr.f32.mxu0 0.0
  %279 = vmatmul.mubr.f32.gmra.mrb[0].mxu0 %v187
  %v280 = vpop.f32.mrb[0].mxu0
  %v281 = vadd.f32 0.0, %v280
  %v282 = vpop.f32.mrb[0].mxu0
  %283 = vmatprep.mubr.f32.mxu0 0.0
  %284 = vmatmul.mubr.f32.gmra.mrb[0].mxu0 %v190
  %v285 = vpop.f32.mrb[0].mxu0
  %v286 = vadd.f32 0.0, %v285
  %v287 = vpop.f32.mrb[0].mxu0
  %288 = vmatprep.mubr.f32.mxu0 0.0
  %289 = vmatmul.mubr.f32.gmra.mrb[0].mxu0 %v193
  %v290 = vpop.f32.mrb[0].mxu0
  %v291 = vadd.f32 0.0, %v290
  %v292 = vpop.f32.mrb[0].mxu0
  %293 = vmatprep.mubr.f32.mxu0 0.0
  %294 = vmatmul.mubr.f32.gmra.mrb[0].mxu0 %v196
  %v295 = vpop.f32.mrb[0].mxu0
  %v296 = vadd.f32 0.0, %v295
  %v297 = vpop.f32.mrb[0].mxu0
  %298 = vmatprep.mubr.f32.mxu0 0.0
  %299 = vmatmul.mubr.f32.gmra.mrb[0].mxu0 %v199
  %v300 = vpop.f32.mrb[0].mxu0
  %v301 = vadd.f32 0.0, %v300
  %v302 = vpop.f32.mrb[0].mxu0
  %303 = vmatprep.mubr.f32.mxu0 0.0
  %304 = vmatmul.mubr.f32.gmra.mrb[0].mxu0 %v202
  %v305 = vpop.f32.mrb[0].mxu0
  %v306 = vadd.f32 0.0, %v305
  %v307 = vpop.f32.mrb[0].mxu0
  %308 = vdwg.mxu0
  loop: start=0, step=1, limit=5
  $region30: #{sr_model_forward.1} parent=0 // loop_pre_header
    _
  $region31: #{sr_model_forward.1} parent=0 // loop_header
    %s310 = sphi 0, %s314
    %p311 = scmp.ge.s32.totalorder %s310, 5
    %v315 = vphi %v271, %v323
    %v316 = vphi %v276, %v324
    %v317 = vphi %v281, %v325
    %v318 = vphi %v286, %v326
    %v319 = vphi %v291, %v327
    %v320 = vphi %v296, %v328
    %v321 = vphi %v301, %v329
    %v322 = vphi %v306, %v330
    %v323 = vphi %v271, %v2555
    %v324 = vphi %v276, %v2556
    %v325 = vphi %v281, %v2557
    %v326 = vphi %v286, %v2558
    %v327 = vphi %v291, %v2559
    %v328 = vphi %v296, %v2560
    %v329 = vphi %v301, %v2561
    %v330 = vphi %v306, %v2562
  $region32: #{sr_model_forward.1} parent=0 // loop_header_branch
    %313 = sbr.rel (%p311) target = $region36
  $region33: #{sr_model_forward.1} parent=0 // loop_body
    %v331 = vpack.c.bf16 %v324, %v323
    %v332 = vpack.c.bf16 %v326, %v325
    %v333 = vpack.c.bf16 %v328, %v327
    %v334 = vpack.c.bf16 %v330, %v329
    %v335 = vld [vmem:[%s5] sm:$0xff]
    %v336 = vld [vmem:[%s5 + $0x8] sm:$0xff]
    %v337 = vld [vmem:[%s5 + $0x10] sm:$0xf]
    %v338 = vld [vmem:[%s5 + $0x14] sm:$0xff]
    %v339 = vld [vmem:[%s5 + $0x1c] sm:$0xff]
    %v340 = vld [vmem:[%s5 + $0x24] sm:$0xf]
    %v341 = vld [vmem:[%s5 + $0x28] sm:$0xff]
    %v342 = vld [vmem:[%s5 + $0x30] sm:$0xff]
    %v343 = vld [vmem:[%s5 + $0x38] sm:$0xf]
    %v344 = vld [vmem:[%s5 + $0x3c] sm:$0xff]
    %v345 = vld [vmem:[%s5 + $0x44] sm:$0xff]
    %v346 = vld [vmem:[%s5 + $0x4c] sm:$0xf]
    %v347 = vld [vmem:[%s5 + $0x50] sm:$0xff]
    %v348 = vld [vmem:[%s5 + $0x58] sm:$0xff]
    %v349 = vld [vmem:[%s5 + $0x60] sm:$0xf]
    %v350 = vld [vmem:[%s5 + $0x64] sm:$0xff]
    %v351 = vld [vmem:[%s5 + $0x6c] sm:$0xff]
    %v352 = vld [vmem:[%s5 + $0x74] sm:$0xf]
    %v353 = vld [vmem:[%s5 + $0x78] sm:$0xff]
    %v354 = vld [vmem:[%s5 + $0x80] sm:$0xff]
    %v355 = vld [vmem:[%s5 + $0x88] sm:$0xf]
    %v356 = vld [vmem:[%s5 + $0x8c] sm:$0xff]
    %v357 = vld [vmem:[%s5 + $0x94] sm:$0xff]
    %v358 = vld [vmem:[%s5 + $0x9c] sm:$0xf]
    %v359 = vld [vmem:[%s5 + $0xa0] sm:$0xff]
    %v360 = vld [vmem:[%s5 + $0xa8] sm:$0xff]
    %v361 = vld [vmem:[%s5 + $0xb0] sm:$0xf]
    %v362 = vld [vmem:[%s5 + $0xb4] sm:$0xff]
    %v363 = vld [vmem:[%s5 + $0xbc] sm:$0xff]
    %v364 = vld [vmem:[%s5 + $0xc4] sm:$0xf]
    %v365 = vld [vmem:[%s5 + $0xc8] sm:$0xff]
    %v366 = vld [vmem:[%s5 + $0xd0] sm:$0xff]
    %v367 = vld [vmem:[%s5 + $0xd8] sm:$0xf]
    %v368 = vld [vmem:[%s5 + $0xdc] sm:$0xff]
    %v369 = vld [vmem:[%s5 + $0xe4] sm:$0xff]
    %v370 = vld [vmem:[%s5 + $0xec] sm:$0xf]
    %v371 = vld [vmem:[%s5 + $0xf0] sm:$0xff]
    %v372 = vld [vmem:[%s5 + $0xf8] sm:$0xff]
    %v373 = vld [vmem:[%s5 + $0x100] sm:$0xf]
    %v374 = vld [vmem:[%s5 + $0x104] sm:$0xff]
    %v375 = vld [vmem:[%s5 + $0x10c] sm:$0xff]
    %v376 = vld [vmem:[%s5 + $0x114] sm:$0xf]
    %v377 = vld [vmem:[%s5 + $0x118] sm:$0xff]
    %v378 = vld [vmem:[%s5 + $0x120] sm:$0xff]
    %v379 = vld [vmem:[%s5 + $0x128] sm:$0xf]
    %v380 = vld [vmem:[%s5 + $0x12c] sm:$0xff]
    %v381 = vld [vmem:[%s5 + $0x134] sm:$0xff]
    %v382 = vld [vmem:[%s5 + $0x13c] sm:$0xf]
    %v431 = vunpack.c.l.b16 %v335
    %v432 = vunpack.c.h.b16 %v335
    %v433 = vunpack.c.l.b16 %v336
    %v434 = vunpack.c.h.b16 %v336
    %v435 = vunpack.c.l.b16 %v337
    %v436 = vunpack.c.l.b16 %v338
    %v437 = vunpack.c.h.b16 %v338
    %v438 = vunpack.c.l.b16 %v339
    %v439 = vunpack.c.h.b16 %v339
    %v440 = vunpack.c.l.b16 %v340
    %v441 = vunpack.c.l.b16 %v341
    %v442 = vunpack.c.h.b16 %v341
    %v443 = vunpack.c.l.b16 %v342
    %v444 = vunpack.c.h.b16 %v342
    %v445 = vunpack.c.l.b16 %v343
    %v446 = vunpack.c.l.b16 %v344
    %v447 = vunpack.c.h.b16 %v344
    %v448 = vunpack.c.l.b16 %v345
    %v449 = vunpack.c.h.b16 %v345
    %v450 = vunpack.c.l.b16 %v346
    %v451 = vunpack.c.l.b16 %v347
    %v452 = vunpack.c.h.b16 %v347
    %v453 = vunpack.c.l.b16 %v348
    %v454 = vunpack.c.h.b16 %v348
    %v455 = vunpack.c.l.b16 %v349
    %v456 = vunpack.c.l.b16 %v350
    %v457 = vunpack.c.h.b16 %v350
    %v458 = vunpack.c.l.b16 %v351
    %v459 = vunpack.c.h.b16 %v351
    %v460 = vunpack.c.l.b16 %v352
    %v461 = vunpack.c.l.b16 %v353
    %v462 = vunpack.c.h.b16 %v353
    %v463 = vunpack.c.l.b16 %v354
    %v464 = vunpack.c.h.b16 %v354
    %v465 = vunpack.c.l.b16 %v355
    %v466 = vunpack.c.l.b16 %v356
    %v467 = vunpack.c.h.b16 %v356
    %v468 = vunpack.c.l.b16 %v357
    %v469 = vunpack.c.h.b16 %v357
    %v470 = vunpack.c.l.b16 %v358
    %v471 = vunpack.c.l.b16 %v359
    %v472 = vunpack.c.h.b16 %v359
    %v473 = vunpack.c.l.b16 %v360
    %v474 = vunpack.c.h.b16 %v360
    %v475 = vunpack.c.l.b16 %v361
    %v476 = vunpack.c.l.b16 %v362
    %v477 = vunpack.c.h.b16 %v362
    %v478 = vunpack.c.l.b16 %v363
    %v479 = vunpack.c.h.b16 %v363
    %v480 = vunpack.c.l.b16 %v364
    %v481 = vunpack.c.l.b16 %v365
    %v482 = vunpack.c.h.b16 %v365
    %v483 = vunpack.c.l.b16 %v366
    %v484 = vunpack.c.h.b16 %v366
    %v485 = vunpack.c.l.b16 %v367
    %v486 = vunpack.c.l.b16 %v368
    %v487 = vunpack.c.h.b16 %v368
    %v488 = vunpack.c.l.b16 %v369
    %v489 = vunpack.c.h.b16 %v369
    %v490 = vunpack.c.l.b16 %v370
    %v491 = vunpack.c.l.b16 %v371
    %v492 = vunpack.c.h.b16 %v371
    %v493 = vunpack.c.l.b16 %v372
    %v494 = vunpack.c.h.b16 %v372
    %v495 = vunpack.c.l.b16 %v373
    %v496 = vunpack.c.l.b16 %v374
    %v497 = vunpack.c.h.b16 %v374
    %v498 = vunpack.c.l.b16 %v375
    %v499 = vunpack.c.h.b16 %v375
    %v500 = vunpack.c.l.b16 %v376
    %v501 = vunpack.c.l.b16 %v377
    %v502 = vunpack.c.h.b16 %v377
    %v503 = vunpack.c.l.b16 %v378
    %v504 = vunpack.c.h.b16 %v378
    %v505 = vunpack.c.l.b16 %v379
    %v506 = vunpack.c.l.b16 %v380
    %v507 = vunpack.c.h.b16 %v380
    %v508 = vunpack.c.l.b16 %v381
    %v509 = vunpack.c.h.b16 %v381
    %v510 = vunpack.c.l.b16 %v382
    %v511 = vpack.c.b16 %v436, %v431
    %v512 = vpack.c.b16 %v437, %v432
    %v513 = vpack.c.b16 %v438, %v433
    %v514 = vpack.c.b16 %v439, %v434
    %v515 = vpack.c.b16 %v440, %v435
    %v516 = vpack.c.b16 %v446, %v441
    %v517 = vpack.c.b16 %v447, %v442
    %v518 = vpack.c.b16 %v448, %v443
    %v519 = vpack.c.b16 %v449, %v444
    %v520 = vpack.c.b16 %v450, %v445
    %v521 = vpack.c.b16 %v456, %v451
    %v522 = vpack.c.b16 %v457, %v452
    %v523 = vpack.c.b16 %v458, %v453
    %v524 = vpack.c.b16 %v459, %v454
    %v525 = vpack.c.b16 %v460, %v455
    %v526 = vpack.c.b16 %v466, %v461
    %v527 = vpack.c.b16 %v467, %v462
    %v528 = vpack.c.b16 %v468, %v463
    %v529 = vpack.c.b16 %v469, %v464
    %v530 = vpack.c.b16 %v470, %v465
    %v531 = vpack.c.b16 %v476, %v471
    %v532 = vpack.c.b16 %v477, %v472
    %v533 = vpack.c.b16 %v478, %v473
    %v534 = vpack.c.b16 %v479, %v474
    %v535 = vpack.c.b16 %v480, %v475
    %v536 = vpack.c.b16 %v486, %v481
    %v537 = vpack.c.b16 %v487, %v482
    %v538 = vpack.c.b16 %v488, %v483
    %v539 = vpack.c.b16 %v489, %v484
    %v540 = vpack.c.b16 %v490, %v485
    %v541 = vpack.c.b16 %v496, %v491
    %v542 = vpack.c.b16 %v497, %v492
    %v543 = vpack.c.b16 %v498, %v493
    %v544 = vpack.c.b16 %v499, %v494
    %v545 = vpack.c.b16 %v500, %v495
    %v546 = vpack.c.b16 %v506, %v501
    %v547 = vpack.c.b16 %v507, %v502
    %v548 = vpack.c.b16 %v508, %v503
    %v549 = vpack.c.b16 %v509, %v504
    %v550 = vpack.c.b16 %v510, %v505
    %591 = vmatprep.subr.bf16.mxu0 %v512
    %592 = vmatpush1.bf16.msra.mxu0 %v511
    %593 = vmatprep.subr.bf16.mxu0 %v517
    %594 = vmatpush1.bf16.msra.mxu0 %v516
    %595 = vmatprep.subr.bf16.mxu0 %v522
    %596 = vmatpush1.bf16.msra.mxu0 %v521
    %597 = vmatprep.subr.bf16.mxu0 %v527
    %598 = vmatpush1.bf16.msra.mxu0 %v526
    %599 = vmatprep.subr.bf16.mxu0 %v532
    %600 = vmatpush1.bf16.msra.mxu0 %v531
    %601 = vmatprep.subr.bf16.mxu0 %v537
    %602 = vmatpush1.bf16.msra.mxu0 %v536
    %603 = vmatprep.subr.bf16.mxu0 %v542
    %604 = vmatpush1.bf16.msra.mxu0 %v541
    %605 = vmatprep.subr.bf16.mxu0 %v547
    %606 = vmatpush1.bf16.msra.mxu0 %v546
    %607 = vmatprep.subr.bf16.mxu0 0
    %608 = vmatpush1.bf16.msra.mxu0 0
    %609 = vmatprep.subr.bf16.mxu0 0
    %610 = vmatpush1.bf16.msra.mxu0 0
    %611 = vmatprep.subr.bf16.mxu0 0
    %612 = vmatpush1.bf16.msra.mxu0 0
    %613 = vmatprep.subr.bf16.mxu0 0
    %614 = vmatpush1.bf16.msra.mxu0 0
    %615 = vmatprep.subr.bf16.mxu0 0
    %616 = vmatpush1.bf16.msra.mxu0 0
    %617 = vmatprep.subr.bf16.mxu0 0
    %618 = vmatpush1.bf16.msra.mxu0 0
    %619 = vmatprep.subr.bf16.mxu0 0
    %620 = vmatpush1.bf16.msra.mxu0 0
    %621 = vmatprep.subr.bf16.mxu0 0
    %622 = vmatpush1.bf16.msra.mxu0 0
    %623 = vmatprep.mubr.bf16.mxu0 0
    %624 = vmatmul.mubr.bf16.gmra.mrb[0].mxu0 %v331
    %v625 = vpop.f32.mrb[0].mxu0
    %v626 = vadd.f32 0.0, %v625
    %v627 = vpop.f32.mrb[0].mxu0
    %v628 = vadd.f32 0.0, %v627
    %v629 = vpop.f32.mrb[0].mxu0
    %v630 = vadd.f32 0.0, %v629
    %v631 = vpop.f32.mrb[0].mxu0
    %v632 = vadd.f32 0.0, %v631
    %633 = vmatprep.mubr.bf16.mxu0 0
    %634 = vmatmul.mubr.bf16.gmra.mrb[0].mxu0 %v332
    %v635 = vpop.f32.mrb[0].mxu0
    %v636 = vadd.f32 0.0, %v635
    %v637 = vpop.f32.mrb[0].mxu0
    %v638 = vadd.f32 0.0, %v637
    %v639 = vpop.f32.mrb[0].mxu0
    %v640 = vadd.f32 0.0, %v639
    %v641 = vpop.f32.mrb[0].mxu0
    %v642 = vadd.f32 0.0, %v641
    %643 = vmatprep.mubr.bf16.mxu0 0
    %644 = vmatmul.mubr.bf16.gmra.mrb[0].mxu0 %v333
    %v645 = vpop.f32.mrb[0].mxu0
    %v646 = vadd.f32 0.0, %v645
    %v647 = vpop.f32.mrb[0].mxu0
    %v648 = vadd.f32 0.0, %v647
    %v649 = vpop.f32.mrb[0].mxu0
    %v650 = vadd.f32 0.0, %v649
    %v651 = vpop.f32.mrb[0].mxu0
    %v652 = vadd.f32 0.0, %v651
    %653 = vmatprep.mubr.bf16.mxu0 0
    %654 = vmatmul.mubr.bf16.gmra.mrb[0].mxu0 %v334
    %v655 = vpop.f32.mrb[0].mxu0
    %v656 = vadd.f32 0.0, %v655
    %v657 = vpop.f32.mrb[0].mxu0
    %v658 = vadd.f32 0.0, %v657
    %v659 = vpop.f32.mrb[0].mxu0
    %v660 = vadd.f32 0.0, %v659
    %v661 = vpop.f32.mrb[0].mxu0
    %v662 = vadd.f32 0.0, %v661
    %663 = vdwg.mxu0
    %664 = vmatprep.subr.bf16.mxu0 %v514
    %665 = vmatpush1.bf16.msra.mxu0 %v513
    %666 = vmatprep.subr.bf16.mxu0 %v519
    %667 = vmatpush1.bf16.msra.mxu0 %v518
    %668 = vmatprep.subr.bf16.mxu0 %v524
    %669 = vmatpush1.bf16.msra.mxu0 %v523
    %670 = vmatprep.subr.bf16.mxu0 %v529
    %671 = vmatpush1.bf16.msra.mxu0 %v528
    %672 = vmatprep.subr.bf16.mxu0 %v534
    %673 = vmatpush1.bf16.msra.mxu0 %v533
    %674 = vmatprep.subr.bf16.mxu0 %v539
    %675 = vmatpush1.bf16.msra.mxu0 %v538
    %676 = vmatprep.subr.bf16.mxu0 %v544
    %677 = vmatpush1.bf16.msra.mxu0 %v543
    %678 = vmatprep.subr.bf16.mxu0 %v549
    %679 = vmatpush1.bf16.msra.mxu0 %v548
    %680 = vmatprep.subr.bf16.mxu0 0
    %681 = vmatpush1.bf16.msra.mxu0 0
    %682 = vmatprep.subr.bf16.mxu0 0
    %683 = vmatpush1.bf16.msra.mxu0 0
    %684 = vmatprep.subr.bf16.mxu0 0
    %685 = vmatpush1.bf16.msra.mxu0 0
    %686 = vmatprep.subr.bf16.mxu0 0
    %687 = vmatpush1.bf16.msra.mxu0 0
    %688 = vmatprep.subr.bf16.mxu0 0
    %689 = vmatpush1.bf16.msra.mxu0 0
    %690 = vmatprep.subr.bf16.mxu0 0
    %691 = vmatpush1.bf16.msra.mxu0 0
    %692 = vmatprep.subr.bf16.mxu0 0
    %693 = vmatpush1.bf16.msra.mxu0 0
    %694 = vmatprep.subr.bf16.mxu0 0
    %695 = vmatpush1.bf16.msra.mxu0 0
    %696 = vmatprep.mubr.bf16.mxu0 0
    %697 = vmatmul.mubr.bf16.gmra.mrb[0].mxu0 %v331
    %v698 = vpop.f32.mrb[0].mxu0
    %v699 = vadd.f32 0.0, %v698
    %v700 = vpop.f32.mrb[0].mxu0
    %v701 = vadd.f32 0.0, %v700
    %v702 = vpop.f32.mrb[0].mxu0
    %v703 = vadd.f32 0.0, %v702
    %v704 = vpop.f32.mrb[0].mxu0
    %v705 = vadd.f32 0.0, %v704
    %706 = vmatprep.mubr.bf16.mxu0 0
    %707 = vmatmul.mubr.bf16.gmra.mrb[0].mxu0 %v332
    %v708 = vpop.f32.mrb[0].mxu0
    %v709 = vadd.f32 0.0, %v708
    %v710 = vpop.f32.mrb[0].mxu0
    %v711 = vadd.f32 0.0, %v710
    %v712 = vpop.f32.mrb[0].mxu0
    %v713 = vadd.f32 0.0, %v712
    %v714 = vpop.f32.mrb[0].mxu0
    %v715 = vadd.f32 0.0, %v714
    %716 = vmatprep.mubr.bf16.mxu0 0
    %717 = vmatmul.mubr.bf16.gmra.mrb[0].mxu0 %v333
    %v718 = vpop.f32.mrb[0].mxu0
    %v719 = vadd.f32 0.0, %v718
    %v720 = vpop.f32.mrb[0].mxu0
    %v721 = vadd.f32 0.0, %v720
    %v722 = vpop.f32.mrb[0].mxu0
    %v723 = vadd.f32 0.0, %v722
    %v724 = vpop.f32.mrb[0].mxu0
    %v725 = vadd.f32 0.0, %v724
    %726 = vmatprep.mubr.bf16.mxu0 0
    %727 = vmatmul.mubr.bf16.gmra.mrb[0].mxu0 %v334
    %v728 = vpop.f32.mrb[0].mxu0
    %v729 = vadd.f32 0.0, %v728
    %v730 = vpop.f32.mrb[0].mxu0
    %v731 = vadd.f32 0.0, %v730
    %v732 = vpop.f32.mrb[0].mxu0
    %v733 = vadd.f32 0.0, %v732
    %v734 = vpop.f32.mrb[0].mxu0
    %v735 = vadd.f32 0.0, %v734
    %736 = vdwg.mxu0
    %737 = vmatprep.subr.bf16.mxu0 0
    %738 = vmatpush1.bf16.msra.mxu0 %v515
    %739 = vmatprep.subr.bf16.mxu0 0
    %740 = vmatpush1.bf16.msra.mxu0 %v520
    %741 = vmatprep.subr.bf16.mxu0 0
    %742 = vmatpush1.bf16.msra.mxu0 %v525
    %743 = vmatprep.subr.bf16.mxu0 0
    %744 = vmatpush1.bf16.msra.mxu0 %v530
    %745 = vmatprep.subr.bf16.mxu0 0
    %746 = vmatpush1.bf16.msra.mxu0 %v535
    %747 = vmatprep.subr.bf16.mxu0 0
    %748 = vmatpush1.bf16.msra.mxu0 %v540
    %749 = vmatprep.subr.bf16.mxu0 0
    %750 = vmatpush1.bf16.msra.mxu0 %v545
    %751 = vmatprep.subr.bf16.mxu0 0
    %752 = vmatpush1.bf16.msra.mxu0 %v550
    %753 = vmatprep.subr.bf16.mxu0 0
    %754 = vmatpush1.bf16.msra.mxu0 0
    %755 = vmatprep.subr.bf16.mxu0 0
    %756 = vmatpush1.bf16.msra.mxu0 0
    %757 = vmatprep.subr.bf16.mxu0 0
    %758 = vmatpush1.bf16.msra.mxu0 0
    %759 = vmatprep.subr.bf16.mxu0 0
    %760 = vmatpush1.bf16.msra.mxu0 0
    %761 = vmatprep.subr.bf16.mxu0 0
    %762 = vmatpush1.bf16.msra.mxu0 0
    %763 = vmatprep.subr.bf16.mxu0 0
    %764 = vmatpush1.bf16.msra.mxu0 0
    %765 = vmatprep.subr.bf16.mxu0 0
    %766 = vmatpush1.bf16.msra.mxu0 0
    %767 = vmatprep.subr.bf16.mxu0 0
    %768 = vmatpush1.bf16.msra.mxu0 0
    %769 = vmatprep.mubr.bf16.mxu0 0
    %770 = vmatmul.mubr.bf16.gmra.mrb[0].mxu0 %v331
    %v771 = vpop.f32.mrb[0].mxu0
    %v772 = vadd.f32 0.0, %v771
    %v773 = vpop.f32.mrb[0].mxu0
    %v774 = vpop.f32.mrb[0].mxu0
    %v775 = vadd.f32 0.0, %v774
    %v776 = vpop.f32.mrb[0].mxu0
    %777 = vmatprep.mubr.bf16.mxu0 0
    %778 = vmatmul.mubr.bf16.gmra.mrb[0].mxu0 %v332
    %v779 = vpop.f32.mrb[0].mxu0
    %v780 = vadd.f32 0.0, %v779
    %v781 = vpop.f32.mrb[0].mxu0
    %v782 = vpop.f32.mrb[0].mxu0
    %v783 = vadd.f32 0.0, %v782
    %v784 = vpop.f32.mrb[0].mxu0
    %785 = vmatprep.mubr.bf16.mxu0 0
    %786 = vmatmul.mubr.bf16.gmra.mrb[0].mxu0 %v333
    %v787 = vpop.f32.mrb[0].mxu0
    %v788 = vadd.f32 0.0, %v787
    %v789 = vpop.f32.mrb[0].mxu0
    %v790 = vpop.f32.mrb[0].mxu0
    %v791 = vadd.f32 0.0, %v790
    %v792 = vpop.f32.mrb[0].mxu0
    %793 = vmatprep.mubr.bf16.mxu0 0
    %794 = vmatmul.mubr.bf16.gmra.mrb[0].mxu0 %v334
    %v795 = vpop.f32.mrb[0].mxu0
    %v796 = vadd.f32 0.0, %v795
    %v797 = vpop.f32.mrb[0].mxu0
    %v798 = vpop.f32.mrb[0].mxu0
    %v799 = vadd.f32 0.0, %v798
    %v800 = vpop.f32.mrb[0].mxu0
    %801 = vdwg.mxu0
    %v802 = vpack.c.bf16 %v630, %v626
    %v803 = vpack.c.bf16 %v640, %v636
    %v804 = vpack.c.bf16 %v650, %v646
    %v805 = vpack.c.bf16 %v660, %v656
    %v806 = vld [vmem:[%s3] sm:$0xf]
    %v807 = vld [vmem:[%s3 + $0x4] sm:$0xf]
    %v808 = vld [vmem:[%s3 + $0x8] sm:$0xf]
    %v809 = vld [vmem:[%s3 + $0xc] sm:$0xf]
    %v810 = vld [vmem:[%s3 + $0x10] sm:$0xf]
    %v811 = vld [vmem:[%s3 + $0x14] sm:$0xf]
    %v812 = vld [vmem:[%s3 + $0x18] sm:$0xf]
    %v813 = vld [vmem:[%s3 + $0x1c] sm:$0xf]
    %v822 = vunpack.c.l.b16 %v806
    %v823 = vunpack.c.l.b16 %v807
    %v824 = vunpack.c.l.b16 %v808
    %v825 = vunpack.c.l.b16 %v809
    %v826 = vunpack.c.l.b16 %v810
    %v827 = vunpack.c.l.b16 %v811
    %v828 = vunpack.c.l.b16 %v812
    %v829 = vunpack.c.l.b16 %v813
    %v830 = vpack.c.b16 %v823, %v822
    %v831 = vpack.c.b16 %v825, %v824
    %v832 = vpack.c.b16 %v827, %v826
    %v833 = vpack.c.b16 %v829, %v828
    %v835 = vsel %vm179, %v830, 0
    %v838 = vsel %vm179, %v831, 0
    %v841 = vsel %vm179, %v832, 0
    %v844 = vsel %vm179, %v833, 0
    %846 = vmatprep.subr.bf16.mxu0 0
    %847 = vmatpush1.bf16.msra.mxu0 %v802
    %848 = vmatprep.subr.bf16.mxu0 0
    %849 = vmatpush1.bf16.msra.mxu0 %v803
    %850 = vmatprep.subr.bf16.mxu0 0
    %851 = vmatpush1.bf16.msra.mxu0 %v804
    %852 = vmatprep.subr.bf16.mxu0 0
    %853 = vmatpush1.bf16.msra.mxu0 %v805
    %854 = vmatprep.subr.bf16.mxu0 0
    %855 = vmatpush1.bf16.msra.mxu0 0
    %856 = vmatprep.subr.bf16.mxu0 0
    %857 = vmatpush1.bf16.msra.mxu0 0
    %858 = vmatprep.subr.bf16.mxu0 0
    %859 = vmatpush1.bf16.msra.mxu0 0
    %860 = vmatprep.subr.bf16.mxu0 0
    %861 = vmatpush1.bf16.msra.mxu0 0
    %862 = vmatprep.subr.bf16.mxu0 0
    %863 = vmatpush1.bf16.msra.mxu0 0
    %864 = vmatprep.subr.bf16.mxu0 0
    %865 = vmatpush1.bf16.msra.mxu0 0
    %866 = vmatprep.subr.bf16.mxu0 0
    %867 = vmatpush1.bf16.msra.mxu0 0
    %868 = vmatprep.subr.bf16.mxu0 0
    %869 = vmatpush1.bf16.msra.mxu0 0
    %870 = vmatprep.subr.bf16.mxu0 0
    %871 = vmatpush1.bf16.msra.mxu0 0
    %872 = vmatprep.subr.bf16.mxu0 0
    %873 = vmatpush1.bf16.msra.mxu0 0
    %874 = vmatprep.subr.bf16.mxu0 0
    %875 = vmatpush1.bf16.msra.mxu0 0
    %876 = vmatprep.subr.bf16.mxu0 0
    %877 = vmatpush1.bf16.msra.mxu0 0
    %878 = vmatprep.mubr.bf16.mxu0 0
    %879 = vmatmul.mubr.bf16.gmra.mrb[0].mxu0 %v835
    %v880 = vpop.f32.mrb[0].mxu0
    %v881 = vadd.f32 0.0, %v880
    %v882 = vpop.f32.mrb[0].mxu0
    %v883 = vpop.f32.mrb[0].mxu0
    %v884 = vadd.f32 0.0, %v883
    %v885 = vpop.f32.mrb[0].mxu0
    %886 = vmatprep.mubr.bf16.mxu0 0
    %887 = vmatmul.mubr.bf16.gmra.mrb[0].mxu0 %v838
    %v888 = vpop.f32.mrb[0].mxu0
    %v889 = vadd.f32 0.0, %v888
    %v890 = vpop.f32.mrb[0].mxu0
    %v891 = vpop.f32.mrb[0].mxu0
    %v892 = vadd.f32 0.0, %v891
    %v893 = vpop.f32.mrb[0].mxu0
    %894 = vmatprep.mubr.bf16.mxu0 0
    %895 = vmatmul.mubr.bf16.gmra.mrb[0].mxu0 %v841
    %v896 = vpop.f32.mrb[0].mxu0
    %v897 = vadd.f32 0.0, %v896
    %v898 = vpop.f32.mrb[0].mxu0
    %v899 = vpop.f32.mrb[0].mxu0
    %v900 = vadd.f32 0.0, %v899
    %v901 = vpop.f32.mrb[0].mxu0
    %902 = vmatprep.mubr.bf16.mxu0 0
    %903 = vmatmul.mubr.bf16.gmra.mrb[0].mxu0 %v844
    %v904 = vpop.f32.mrb[0].mxu0
    %v905 = vadd.f32 0.0, %v904
    %v906 = vpop.f32.mrb[0].mxu0
    %v907 = vpop.f32.mrb[0].mxu0
    %v908 = vadd.f32 0.0, %v907
    %v909 = vpop.f32.mrb[0].mxu0
    %910 = vdwg.mxu0
    %v911 = vmax.f32 %v881, -1.6666666
    %v912 = vmax.f32 %v884, -1.6666666
    %v913 = vmax.f32 %v889, -1.6666666
    %v914 = vmax.f32 %v892, -1.6666666
    %v915 = vmax.f32 %v897, -1.6666666
    %v916 = vmax.f32 %v900, -1.6666666
    %v917 = vmax.f32 %v905, -1.6666666
    %v918 = vmax.f32 %v908, -1.6666666
    %v919 = vmin.f32 %v911, 1.6666666
    %v920 = vmin.f32 %v912, 1.6666666
    %v921 = vmin.f32 %v913, 1.6666666
    %v922 = vmin.f32 %v914, 1.6666666
    %v923 = vmin.f32 %v915, 1.6666666
    %v924 = vmin.f32 %v916, 1.6666666
    %v925 = vmin.f32 %v917, 1.6666666
    %v926 = vmin.f32 %v918, 1.6666666
    %v927 = vsub.f32 0.0, %v919
    %v928 = vsub.f32 0.0, %v920
    %v929 = vsub.f32 0.0, %v921
    %v930 = vsub.f32 0.0, %v922
    %v931 = vsub.f32 0.0, %v923
    %v932 = vsub.f32 0.0, %v924
    %v933 = vsub.f32 0.0, %v925
    %v934 = vsub.f32 0.0, %v926
    %v935 = vpack.c.bf16 %v928, %v927
    %v936 = vpack.c.bf16 %v930, %v929
    %v937 = vpack.c.bf16 %v932, %v931
    %v938 = vpack.c.bf16 %v934, %v933
    %v939 = vld [vmem:[%s4] sm:$0xf]
    %v940 = vld [vmem:[%s4 + $0x4] sm:$0xf]
    %v941 = vld [vmem:[%s4 + $0x8] sm:$0xf]
    %v942 = vld [vmem:[%s4 + $0xc] sm:$0xf]
    %v943 = vld [vmem:[%s4 + $0x10] sm:$0xf]
    %v944 = vld [vmem:[%s4 + $0x14] sm:$0xf]
    %v945 = vld [vmem:[%s4 + $0x18] sm:$0xf]
    %v946 = vld [vmem:[%s4 + $0x1c] sm:$0xf]
    %v955 = vunpack.c.l.b16 %v939
    %v956 = vunpack.c.l.b16 %v940
    %v957 = vunpack.c.l.b16 %v941
    %v958 = vunpack.c.l.b16 %v942
    %v959 = vunpack.c.l.b16 %v943
    %v960 = vunpack.c.l.b16 %v944
    %v961 = vunpack.c.l.b16 %v945
    %v962 = vunpack.c.l.b16 %v946
    %v963 = vpack.c.b16 %v956, %v955
    %v964 = vpack.c.b16 %v958, %v957
    %v965 = vpack.c.b16 %v960, %v959
    %v966 = vpack.c.b16 %v962, %v961
    %v968 = vsel %vm179, %v963, 0
    %v971 = vsel %vm179, %v964, 0
    %v974 = vsel %vm179, %v965, 0
    %v977 = vsel %vm179, %v966, 0
    %979 = vmatprep.subr.bf16.mxu0 0
    %980 = vmatpush1.bf16.msra.mxu0 %v935
    %981 = vmatprep.subr.bf16.mxu0 0
    %982 = vmatpush1.bf16.msra.mxu0 %v936
    %983 = vmatprep.subr.bf16.mxu0 0
    %984 = vmatpush1.bf16.msra.mxu0 %v937
    %985 = vmatprep.subr.bf16.mxu0 0
    %986 = vmatpush1.bf16.msra.mxu0 %v938
    %987 = vmatprep.subr.bf16.mxu0 0
    %988 = vmatpush1.bf16.msra.mxu0 0
    %989 = vmatprep.subr.bf16.mxu0 0
    %990 = vmatpush1.bf16.msra.mxu0 0
    %991 = vmatprep.subr.bf16.mxu0 0
    %992 = vmatpush1.bf16.msra.mxu0 0
    %993 = vmatprep.subr.bf16.mxu0 0
    %994 = vmatpush1.bf16.msra.mxu0 0
    %995 = vmatprep.subr.bf16.mxu0 0
    %996 = vmatpush1.bf16.msra.mxu0 0
    %997 = vmatprep.subr.bf16.mxu0 0
    %998 = vmatpush1.bf16.msra.mxu0 0
    %999 = vmatprep.subr.bf16.mxu0 0
    %1000 = vmatpush1.bf16.msra.mxu0 0
    %1001 = vmatprep.subr.bf16.mxu0 0
    %1002 = vmatpush1.bf16.msra.mxu0 0
    %1003 = vmatprep.subr.bf16.mxu0 0
    %1004 = vmatpush1.bf16.msra.mxu0 0
    %1005 = vmatprep.subr.bf16.mxu0 0
    %1006 = vmatpush1.bf16.msra.mxu0 0
    %1007 = vmatprep.subr.bf16.mxu0 0
    %1008 = vmatpush1.bf16.msra.mxu0 0
    %1009 = vmatprep.subr.bf16.mxu0 0
    %1010 = vmatpush1.bf16.msra.mxu0 0
    %1011 = vmatprep.mubr.bf16.mxu0 0
    %1012 = vmatmul.mubr.bf16.gmra.mrb[0].mxu0 %v968
    %v1013 = vpop.f32.mrb[0].mxu0
    %v1014 = vadd.f32 0.0, %v1013
    %v1015 = vpop.f32.mrb[0].mxu0
    %v1016 = vpop.f32.mrb[0].mxu0
    %v1017 = vadd.f32 0.0, %v1016
    %v1018 = vpop.f32.mrb[0].mxu0
    %1019 = vmatprep.mubr.bf16.mxu0 0
    %1020 = vmatmul.mubr.bf16.gmra.mrb[0].mxu0 %v971
    %v1021 = vpop.f32.mrb[0].mxu0
    %v1022 = vadd.f32 0.0, %v1021
    %v1023 = vpop.f32.mrb[0].mxu0
    %v1024 = vpop.f32.mrb[0].mxu0
    %v1025 = vadd.f32 0.0, %v1024
    %v1026 = vpop.f32.mrb[0].mxu0
    %1027 = vmatprep.mubr.bf16.mxu0 0
    %1028 = vmatmul.mubr.bf16.gmra.mrb[0].mxu0 %v974
    %v1029 = vpop.f32.mrb[0].mxu0
    %v1030 = vadd.f32 0.0, %v1029
    %v1031 = vpop.f32.mrb[0].mxu0
    %v1032 = vpop.f32.mrb[0].mxu0
    %v1033 = vadd.f32 0.0, %v1032
    %v1034 = vpop.f32.mrb[0].mxu0
    %1035 = vmatprep.mubr.bf16.mxu0 0
    %1036 = vmatmul.mubr.bf16.gmra.mrb[0].mxu0 %v977
    %v1037 = vpop.f32.mrb[0].mxu0
    %v1038 = vadd.f32 0.0, %v1037
    %v1039 = vpop.f32.mrb[0].mxu0
    %v1040 = vpop.f32.mrb[0].mxu0
    %v1041 = vadd.f32 0.0, %v1040
    %v1042 = vpop.f32.mrb[0].mxu0
    %1043 = vdwg.mxu0
    %v1044 = vpack.c.bf16 %v1017, %v1014
    %v1045 = vpack.c.bf16 %v1025, %v1022
    %v1046 = vpack.c.bf16 %v1033, %v1030
    %v1047 = vpack.c.bf16 %v1041, %v1038
    %v1048 = vpack.c.bf16 %v632, %v628
    %v1049 = vpack.c.bf16 %v642, %v638
    %v1050 = vpack.c.bf16 %v652, %v648
    %v1051 = vpack.c.bf16 %v662, %v658
    %s1052 = scalar_lea.vmem %s3, 32
    %v1053 = vld [vmem:[%s1052] sm:$0xf]
    %v1054 = vld [vmem:[%s1052 + $0x4] sm:$0xf]
    %v1055 = vld [vmem:[%s1052 + $0x8] sm:$0xf]
    %v1056 = vld [vmem:[%s1052 + $0xc] sm:$0xf]
    %v1057 = vld [vmem:[%s1052 + $0x10] sm:$0xf]
    %v1058 = vld [vmem:[%s1052 + $0x14] sm:$0xf]
    %v1059 = vld [vmem:[%s1052 + $0x18] sm:$0xf]
    %v1060 = vld [vmem:[%s1052 + $0x1c] sm:$0xf]
    %v1069 = vunpack.c.l.b16 %v1053
    %v1070 = vunpack.c.l.b16 %v1054
    %v1071 = vunpack.c.l.b16 %v1055
    %v1072 = vunpack.c.l.b16 %v1056
    %v1073 = vunpack.c.l.b16 %v1057
    %v1074 = vunpack.c.l.b16 %v1058
    %v1075 = vunpack.c.l.b16 %v1059
    %v1076 = vunpack.c.l.b16 %v1060
    %v1077 = vpack.c.b16 %v1070, %v1069
    %v1078 = vpack.c.b16 %v1072, %v1071
    %v1079 = vpack.c.b16 %v1074, %v1073
    %v1080 = vpack.c.b16 %v1076, %v1075
    %v1082 = vsel %vm179, %v1077, 0
    %v1085 = vsel %vm179, %v1078, 0
    %v1088 = vsel %vm179, %v1079, 0
    %v1091 = vsel %vm179, %v1080, 0
    %1093 = vmatprep.subr.bf16.mxu0 0
    %1094 = vmatpush1.bf16.msra.mxu0 %v1048
    %1095 = vmatprep.subr.bf16.mxu0 0
    %1096 = vmatpush1.bf16.msra.mxu0 %v1049
    %1097 = vmatprep.subr.bf16.mxu0 0
    %1098 = vmatpush1.bf16.msra.mxu0 %v1050
    %1099 = vmatprep.subr.bf16.mxu0 0
    %1100 = vmatpush1.bf16.msra.mxu0 %v1051
    %1101 = vmatprep.subr.bf16.mxu0 0
    %1102 = vmatpush1.bf16.msra.mxu0 0
    %1103 = vmatprep.subr.bf16.mxu0 0
    %1104 = vmatpush1.bf16.msra.mxu0 0
    %1105 = vmatprep.subr.bf16.mxu0 0
    %1106 = vmatpush1.bf16.msra.mxu0 0
    %1107 = vmatprep.subr.bf16.mxu0 0
    %1108 = vmatpush1.bf16.msra.mxu0 0
    %1109 = vmatprep.subr.bf16.mxu0 0
    %1110 = vmatpush1.bf16.msra.mxu0 0
    %1111 = vmatprep.subr.bf16.mxu0 0
    %1112 = vmatpush1.bf16.msra.mxu0 0
    %1113 = vmatprep.subr.bf16.mxu0 0
    %1114 = vmatpush1.bf16.msra.mxu0 0
    %1115 = vmatprep.subr.bf16.mxu0 0
    %1116 = vmatpush1.bf16.msra.mxu0 0
    %1117 = vmatprep.subr.bf16.mxu0 0
    %1118 = vmatpush1.bf16.msra.mxu0 0
    %1119 = vmatprep.subr.bf16.mxu0 0
    %1120 = vmatpush1.bf16.msra.mxu0 0
    %1121 = vmatprep.subr.bf16.mxu0 0
    %1122 = vmatpush1.bf16.msra.mxu0 0
    %1123 = vmatprep.subr.bf16.mxu0 0
    %1124 = vmatpush1.bf16.msra.mxu0 0
    %1125 = vmatprep.mubr.bf16.mxu0 0
    %1126 = vmatmul.mubr.bf16.gmra.mrb[0].mxu0 %v1082
    %v1127 = vpop.f32.mrb[0].mxu0
    %v1128 = vadd.f32 0.0, %v1127
    %v1129 = vpop.f32.mrb[0].mxu0
    %v1130 = vpop.f32.mrb[0].mxu0
    %v1131 = vadd.f32 0.0, %v1130
    %v1132 = vpop.f32.mrb[0].mxu0
    %1133 = vmatprep.mubr.bf16.mxu0 0
    %1134 = vmatmul.mubr.bf16.gmra.mrb[0].mxu0 %v1085
    %v1135 = vpop.f32.mrb[0].mxu0
    %v1136 = vadd.f32 0.0, %v1135
    %v1137 = vpop.f32.mrb[0].mxu0
    %v1138 = vpop.f32.mrb[0].mxu0
    %v1139 = vadd.f32 0.0, %v1138
    %v1140 = vpop.f32.mrb[0].mxu0
    %1141 = vmatprep.mubr.bf16.mxu0 0
    %1142 = vmatmul.mubr.bf16.gmra.mrb[0].mxu0 %v1088
    %v1143 = vpop.f32.mrb[0].mxu0
    %v1144 = vadd.f32 0.0, %v1143
    %v1145 = vpop.f32.mrb[0].mxu0
    %v1146 = vpop.f32.mrb[0].mxu0
    %v1147 = vadd.f32 0.0, %v1146
    %v1148 = vpop.f32.mrb[0].mxu0
    %1149 = vmatprep.mubr.bf16.mxu0 0
    %1150 = vmatmul.mubr.bf16.gmra.mrb[0].mxu0 %v1091
    %v1151 = vpop.f32.mrb[0].mxu0
    %v1152 = vadd.f32 0.0, %v1151
    %v1153 = vpop.f32.mrb[0].mxu0
    %v1154 = vpop.f32.mrb[0].mxu0
    %v1155 = vadd.f32 0.0, %v1154
    %v1156 = vpop.f32.mrb[0].mxu0
    %1157 = vdwg.mxu0
    %v1158 = vmax.f32 %v1128, -1.6666666
    %v1159 = vmax.f32 %v1131, -1.6666666
    %v1160 = vmax.f32 %v1136, -1.6666666
    %v1161 = vmax.f32 %v1139, -1.6666666
    %v1162 = vmax.f32 %v1144, -1.6666666
    %v1163 = vmax.f32 %v1147, -1.6666666
    %v1164 = vmax.f32 %v1152, -1.6666666
    %v1165 = vmax.f32 %v1155, -1.6666666
    %v1166 = vmin.f32 %v1158, 1.6666666
    %v1167 = vmin.f32 %v1159, 1.6666666
    %v1168 = vmin.f32 %v1160, 1.6666666
    %v1169 = vmin.f32 %v1161, 1.6666666
    %v1170 = vmin.f32 %v1162, 1.6666666
    %v1171 = vmin.f32 %v1163, 1.6666666
    %v1172 = vmin.f32 %v1164, 1.6666666
    %v1173 = vmin.f32 %v1165, 1.6666666
    %v1174 = vsub.f32 0.0, %v1166
    %v1175 = vsub.f32 0.0, %v1167
    %v1176 = vsub.f32 0.0, %v1168
    %v1177 = vsub.f32 0.0, %v1169
    %v1178 = vsub.f32 0.0, %v1170
    %v1179 = vsub.f32 0.0, %v1171
    %v1180 = vsub.f32 0.0, %v1172
    %v1181 = vsub.f32 0.0, %v1173
    %v1182 = vpack.c.bf16 %v1175, %v1174
    %v1183 = vpack.c.bf16 %v1177, %v1176
    %v1184 = vpack.c.bf16 %v1179, %v1178
    %v1185 = vpack.c.bf16 %v1181, %v1180
    %s1186 = scalar_lea.vmem %s4, 32
    %v1187 = vld [vmem:[%s1186] sm:$0xf]
    %v1188 = vld [vmem:[%s1186 + $0x4] sm:$0xf]
    %v1189 = vld [vmem:[%s1186 + $0x8] sm:$0xf]
    %v1190 = vld [vmem:[%s1186 + $0xc] sm:$0xf]
    %v1191 = vld [vmem:[%s1186 + $0x10] sm:$0xf]
    %v1192 = vld [vmem:[%s1186 + $0x14] sm:$0xf]
    %v1193 = vld [vmem:[%s1186 + $0x18] sm:$0xf]
    %v1194 = vld [vmem:[%s1186 + $0x1c] sm:$0xf]
    %v1203 = vunpack.c.l.b16 %v1187
    %v1204 = vunpack.c.l.b16 %v1188
    %v1205 = vunpack.c.l.b16 %v1189
    %v1206 = vunpack.c.l.b16 %v1190
    %v1207 = vunpack.c.l.b16 %v1191
    %v1208 = vunpack.c.l.b16 %v1192
    %v1209 = vunpack.c.l.b16 %v1193
    %v1210 = vunpack.c.l.b16 %v1194
    %v1211 = vpack.c.b16 %v1204, %v1203
    %v1212 = vpack.c.b16 %v1206, %v1205
    %v1213 = vpack.c.b16 %v1208, %v1207
    %v1214 = vpack.c.b16 %v1210, %v1209
    %v1216 = vsel %vm179, %v1211, 0
    %v1219 = vsel %vm179, %v1212, 0
    %v1222 = vsel %vm179, %v1213, 0
    %v1225 = vsel %vm179, %v1214, 0
    %1227 = vmatprep.subr.bf16.mxu0 0
    %1228 = vmatpush1.bf16.msra.mxu0 %v1182
    %1229 = vmatprep.subr.bf16.mxu0 0
    %1230 = vmatpush1.bf16.msra.mxu0 %v1183
    %1231 = vmatprep.subr.bf16.mxu0 0
    %1232 = vmatpush1.bf16.msra.mxu0 %v1184
    %1233 = vmatprep.subr.bf16.mxu0 0
    %1234 = vmatpush1.bf16.msra.mxu0 %v1185
    %1235 = vmatprep.subr.bf16.mxu0 0
    %1236 = vmatpush1.bf16.msra.mxu0 0
    %1237 = vmatprep.subr.bf16.mxu0 0
    %1238 = vmatpush1.bf16.msra.mxu0 0
    %1239 = vmatprep.subr.bf16.mxu0 0
    %1240 = vmatpush1.bf16.msra.mxu0 0
    %1241 = vmatprep.subr.bf16.mxu0 0
    %1242 = vmatpush1.bf16.msra.mxu0 0
    %1243 = vmatprep.subr.bf16.mxu0 0
    %1244 = vmatpush1.bf16.msra.mxu0 0
    %1245 = vmatprep.subr.bf16.mxu0 0
    %1246 = vmatpush1.bf16.msra.mxu0 0
    %1247 = vmatprep.subr.bf16.mxu0 0
    %1248 = vmatpush1.bf16.msra.mxu0 0
    %1249 = vmatprep.subr.bf16.mxu0 0
    %1250 = vmatpush1.bf16.msra.mxu0 0
    %1251 = vmatprep.subr.bf16.mxu0 0
    %1252 = vmatpush1.bf16.msra.mxu0 0
    %1253 = vmatprep.subr.bf16.mxu0 0
    %1254 = vmatpush1.bf16.msra.mxu0 0
    %1255 = vmatprep.subr.bf16.mxu0 0
    %1256 = vmatpush1.bf16.msra.mxu0 0
    %1257 = vmatprep.subr.bf16.mxu0 0
    %1258 = vmatpush1.bf16.msra.mxu0 0
    %1259 = vmatprep.mubr.bf16.mxu0 0
    %1260 = vmatmul.mubr.bf16.gmra.mrb[0].mxu0 %v1216
    %v1261 = vpop.f32.mrb[0].mxu0
    %v1262 = vadd.f32 0.0, %v1261
    %v1263 = vpop.f32.mrb[0].mxu0
    %v1264 = vpop.f32.mrb[0].mxu0
    %v1265 = vadd.f32 0.0, %v1264
    %v1266 = vpop.f32.mrb[0].mxu0
    %1267 = vmatprep.mubr.bf16.mxu0 0
    %1268 = vmatmul.mubr.bf16.gmra.mrb[0].mxu0 %v1219
    %v1269 = vpop.f32.mrb[0].mxu0
    %v1270 = vadd.f32 0.0, %v1269
    %v1271 = vpop.f32.mrb[0].mxu0
    %v1272 = vpop.f32.mrb[0].mxu0
    %v1273 = vadd.f32 0.0, %v1272
    %v1274 = vpop.f32.mrb[0].mxu0
    %1275 = vmatprep.mubr.bf16.mxu0 0
    %1276 = vmatmul.mubr.bf16.gmra.mrb[0].mxu0 %v1222
    %v1277 = vpop.f32.mrb[0].mxu0
    %v1278 = vadd.f32 0.0, %v1277
    %v1279 = vpop.f32.mrb[0].mxu0
    %v1280 = vpop.f32.mrb[0].mxu0
    %v1281 = vadd.f32 0.0, %v1280
    %v1282 = vpop.f32.mrb[0].mxu0
    %1283 = vmatprep.mubr.bf16.mxu0 0
    %1284 = vmatmul.mubr.bf16.gmra.mrb[0].mxu0 %v1225
    %v1285 = vpop.f32.mrb[0].mxu0
    %v1286 = vadd.f32 0.0, %v1285
    %v1287 = vpop.f32.mrb[0].mxu0
    %v1288 = vpop.f32.mrb[0].mxu0
    %v1289 = vadd.f32 0.0, %v1288
    %v1290 = vpop.f32.mrb[0].mxu0
    %1291 = vdwg.mxu0
    %v1292 = vpack.c.bf16 %v1265, %v1262
    %v1293 = vpack.c.bf16 %v1273, %v1270
    %v1294 = vpack.c.bf16 %v1281, %v1278
    %v1295 = vpack.c.bf16 %v1289, %v1286
    %v1296 = vpack.c.bf16 %v703, %v699
    %v1297 = vpack.c.bf16 %v713, %v709
    %v1298 = vpack.c.bf16 %v723, %v719
    %v1299 = vpack.c.bf16 %v733, %v729
    %s1300 = scalar_lea.vmem %s3, 64
    %v1301 = vld [vmem:[%s1300] sm:$0xf]
    %v1302 = vld [vmem:[%s1300 + $0x4] sm:$0xf]
    %v1303 = vld [vmem:[%s1300 + $0x8] sm:$0xf]
    %v1304 = vld [vmem:[%s1300 + $0xc] sm:$0xf]
    %v1305 = vld [vmem:[%s1300 + $0x10] sm:$0xf]
    %v1306 = vld [vmem:[%s1300 + $0x14] sm:$0xf]
    %v1307 = vld [vmem:[%s1300 + $0x18] sm:$0xf]
    %v1308 = vld [vmem:[%s1300 + $0x1c] sm:$0xf]
    %v1317 = vunpack.c.l.b16 %v1301
    %v1318 = vunpack.c.l.b16 %v1302
    %v1319 = vunpack.c.l.b16 %v1303
    %v1320 = vunpack.c.l.b16 %v1304
    %v1321 = vunpack.c.l.b16 %v1305
    %v1322 = vunpack.c.l.b16 %v1306
    %v1323 = vunpack.c.l.b16 %v1307
    %v1324 = vunpack.c.l.b16 %v1308
    %v1325 = vpack.c.b16 %v1318, %v1317
    %v1326 = vpack.c.b16 %v1320, %v1319
    %v1327 = vpack.c.b16 %v1322, %v1321
    %v1328 = vpack.c.b16 %v1324, %v1323
    %v1330 = vsel %vm179, %v1325, 0
    %v1333 = vsel %vm179, %v1326, 0
    %v1336 = vsel %vm179, %v1327, 0
    %v1339 = vsel %vm179, %v1328, 0
    %1341 = vmatprep.subr.bf16.mxu0 0
    %1342 = vmatpush1.bf16.msra.mxu0 %v1296
    %1343 = vmatprep.subr.bf16.mxu0 0
    %1344 = vmatpush1.bf16.msra.mxu0 %v1297
    %1345 = vmatprep.subr.bf16.mxu0 0
    %1346 = vmatpush1.bf16.msra.mxu0 %v1298
    %1347 = vmatprep.subr.bf16.mxu0 0
    %1348 = vmatpush1.bf16.msra.mxu0 %v1299
    %1349 = vmatprep.subr.bf16.mxu0 0
    %1350 = vmatpush1.bf16.msra.mxu0 0
    %1351 = vmatprep.subr.bf16.mxu0 0
    %1352 = vmatpush1.bf16.msra.mxu0 0
    %1353 = vmatprep.subr.bf16.mxu0 0
    %1354 = vmatpush1.bf16.msra.mxu0 0
    %1355 = vmatprep.subr.bf16.mxu0 0
    %1356 = vmatpush1.bf16.msra.mxu0 0
    %1357 = vmatprep.subr.bf16.mxu0 0
    %1358 = vmatpush1.bf16.msra.mxu0 0
    %1359 = vmatprep.subr.bf16.mxu0 0
    %1360 = vmatpush1.bf16.msra.mxu0 0
    %1361 = vmatprep.subr.bf16.mxu0 0
    %1362 = vmatpush1.bf16.msra.mxu0 0
    %1363 = vmatprep.subr.bf16.mxu0 0
    %1364 = vmatpush1.bf16.msra.mxu0 0
    %1365 = vmatprep.subr.bf16.mxu0 0
    %1366 = vmatpush1.bf16.msra.mxu0 0
    %1367 = vmatprep.subr.bf16.mxu0 0
    %1368 = vmatpush1.bf16.msra.mxu0 0
    %1369 = vmatprep.subr.bf16.mxu0 0
    %1370 = vmatpush1.bf16.msra.mxu0 0
    %1371 = vmatprep.subr.bf16.mxu0 0
    %1372 = vmatpush1.bf16.msra.mxu0 0
    %1373 = vmatprep.mubr.bf16.mxu0 0
    %1374 = vmatmul.mubr.bf16.gmra.mrb[0].mxu0 %v1330
    %v1375 = vpop.f32.mrb[0].mxu0
    %v1376 = vadd.f32 0.0, %v1375
    %v1377 = vpop.f32.mrb[0].mxu0
    %v1378 = vpop.f32.mrb[0].mxu0
    %v1379 = vadd.f32 0.0, %v1378
    %v1380 = vpop.f32.mrb[0].mxu0
    %1381 = vmatprep.mubr.bf16.mxu0 0
    %1382 = vmatmul.mubr.bf16.gmra.mrb[0].mxu0 %v1333
    %v1383 = vpop.f32.mrb[0].mxu0
    %v1384 = vadd.f32 0.0, %v1383
    %v1385 = vpop.f32.mrb[0].mxu0
    %v1386 = vpop.f32.mrb[0].mxu0
    %v1387 = vadd.f32 0.0, %v1386
    %v1388 = vpop.f32.mrb[0].mxu0
    %1389 = vmatprep.mubr.bf16.mxu0 0
    %1390 = vmatmul.mubr.bf16.gmra.mrb[0].mxu0 %v1336
    %v1391 = vpop.f32.mrb[0].mxu0
    %v1392 = vadd.f32 0.0, %v1391
    %v1393 = vpop.f32.mrb[0].mxu0
    %v1394 = vpop.f32.mrb[0].mxu0
    %v1395 = vadd.f32 0.0, %v1394
    %v1396 = vpop.f32.mrb[0].mxu0
    %1397 = vmatprep.mubr.bf16.mxu0 0
    %1398 = vmatmul.mubr.bf16.gmra.mrb[0].mxu0 %v1339
    %v1399 = vpop.f32.mrb[0].mxu0
    %v1400 = vadd.f32 0.0, %v1399
    %v1401 = vpop.f32.mrb[0].mxu0
    %v1402 = vpop.f32.mrb[0].mxu0
    %v1403 = vadd.f32 0.0, %v1402
    %v1404 = vpop.f32.mrb[0].mxu0
    %1405 = vdwg.mxu0
    %v1406 = vmax.f32 %v1376, -1.6666666
    %v1407 = vmax.f32 %v1379, -1.6666666
    %v1408 = vmax.f32 %v1384, -1.6666666
    %v1409 = vmax.f32 %v1387, -1.6666666
    %v1410 = vmax.f32 %v1392, -1.6666666
    %v1411 = vmax.f32 %v1395, -1.6666666
    %v1412 = vmax.f32 %v1400, -1.6666666
    %v1413 = vmax.f32 %v1403, -1.6666666
    %v1414 = vmin.f32 %v1406, 1.6666666
    %v1415 = vmin.f32 %v1407, 1.6666666
    %v1416 = vmin.f32 %v1408, 1.6666666
    %v1417 = vmin.f32 %v1409, 1.6666666
    %v1418 = vmin.f32 %v1410, 1.6666666
    %v1419 = vmin.f32 %v1411, 1.6666666
    %v1420 = vmin.f32 %v1412, 1.6666666
    %v1421 = vmin.f32 %v1413, 1.6666666
    %v1422 = vsub.f32 0.0, %v1414
    %v1423 = vsub.f32 0.0, %v1415
    %v1424 = vsub.f32 0.0, %v1416
    %v1425 = vsub.f32 0.0, %v1417
    %v1426 = vsub.f32 0.0, %v1418
    %v1427 = vsub.f32 0.0, %v1419
    %v1428 = vsub.f32 0.0, %v1420
    %v1429 = vsub.f32 0.0, %v1421
    %v1430 = vpack.c.bf16 %v1423, %v1422
    %v1431 = vpack.c.bf16 %v1425, %v1424
    %v1432 = vpack.c.bf16 %v1427, %v1426
    %v1433 = vpack.c.bf16 %v1429, %v1428
    %s1434 = scalar_lea.vmem %s4, 64
    %v1435 = vld [vmem:[%s1434] sm:$0xf]
    %v1436 = vld [vmem:[%s1434 + $0x4] sm:$0xf]
    %v1437 = vld [vmem:[%s1434 + $0x8] sm:$0xf]
    %v1438 = vld [vmem:[%s1434 + $0xc] sm:$0xf]
    %v1439 = vld [vmem:[%s1434 + $0x10] sm:$0xf]
    %v1440 = vld [vmem:[%s1434 + $0x14] sm:$0xf]
    %v1441 = vld [vmem:[%s1434 + $0x18] sm:$0xf]
    %v1442 = vld [vmem:[%s1434 + $0x1c] sm:$0xf]
    %v1451 = vunpack.c.l.b16 %v1435
    %v1452 = vunpack.c.l.b16 %v1436
    %v1453 = vunpack.c.l.b16 %v1437
    %v1454 = vunpack.c.l.b16 %v1438
    %v1455 = vunpack.c.l.b16 %v1439
    %v1456 = vunpack.c.l.b16 %v1440
    %v1457 = vunpack.c.l.b16 %v1441
    %v1458 = vunpack.c.l.b16 %v1442
    %v1459 = vpack.c.b16 %v1452, %v1451
    %v1460 = vpack.c.b16 %v1454, %v1453
    %v1461 = vpack.c.b16 %v1456, %v1455
    %v1462 = vpack.c.b16 %v1458, %v1457
    %v1464 = vsel %vm179, %v1459, 0
    %v1467 = vsel %vm179, %v1460, 0
    %v1470 = vsel %vm179, %v1461, 0
    %v1473 = vsel %vm179, %v1462, 0
    %1475 = vmatprep.subr.bf16.mxu0 0
    %1476 = vmatpush1.bf16.msra.mxu0 %v1430
    %1477 = vmatprep.subr.bf16.mxu0 0
    %1478 = vmatpush1.bf16.msra.mxu0 %v1431
    %1479 = vmatprep.subr.bf16.mxu0 0
    %1480 = vmatpush1.bf16.msra.mxu0 %v1432
    %1481 = vmatprep.subr.bf16.mxu0 0
    %1482 = vmatpush1.bf16.msra.mxu0 %v1433
    %1483 = vmatprep.subr.bf16.mxu0 0
    %1484 = vmatpush1.bf16.msra.mxu0 0
    %1485 = vmatprep.subr.bf16.mxu0 0
    %1486 = vmatpush1.bf16.msra.mxu0 0
    %1487 = vmatprep.subr.bf16.mxu0 0
    %1488 = vmatpush1.bf16.msra.mxu0 0
    %1489 = vmatprep.subr.bf16.mxu0 0
    %1490 = vmatpush1.bf16.msra.mxu0 0
    %1491 = vmatprep.subr.bf16.mxu0 0
    %1492 = vmatpush1.bf16.msra.mxu0 0
    %1493 = vmatprep.subr.bf16.mxu0 0
    %1494 = vmatpush1.bf16.msra.mxu0 0
    %1495 = vmatprep.subr.bf16.mxu0 0
    %1496 = vmatpush1.bf16.msra.mxu0 0
    %1497 = vmatprep.subr.bf16.mxu0 0
    %1498 = vmatpush1.bf16.msra.mxu0 0
    %1499 = vmatprep.subr.bf16.mxu0 0
    %1500 = vmatpush1.bf16.msra.mxu0 0
    %1501 = vmatprep.subr.bf16.mxu0 0
    %1502 = vmatpush1.bf16.msra.mxu0 0
    %1503 = vmatprep.subr.bf16.mxu0 0
    %1504 = vmatpush1.bf16.msra.mxu0 0
    %1505 = vmatprep.subr.bf16.mxu0 0
    %1506 = vmatpush1.bf16.msra.mxu0 0
    %1507 = vmatprep.mubr.bf16.mxu0 0
    %1508 = vmatmul.mubr.bf16.gmra.mrb[0].mxu0 %v1464
    %v1509 = vpop.f32.mrb[0].mxu0
    %v1510 = vadd.f32 0.0, %v1509
    %v1511 = vpop.f32.mrb[0].mxu0
    %v1512 = vpop.f32.mrb[0].mxu0
    %v1513 = vadd.f32 0.0, %v1512
    %v1514 = vpop.f32.mrb[0].mxu0
    %1515 = vmatprep.mubr.bf16.mxu0 0
    %1516 = vmatmul.mubr.bf16.gmra.mrb[0].mxu0 %v1467
    %v1517 = vpop.f32.mrb[0].mxu0
    %v1518 = vadd.f32 0.0, %v1517
    %v1519 = vpop.f32.mrb[0].mxu0
    %v1520 = vpop.f32.mrb[0].mxu0
    %v1521 = vadd.f32 0.0, %v1520
    %v1522 = vpop.f32.mrb[0].mxu0
    %1523 = vmatprep.mubr.bf16.mxu0 0
    %1524 = vmatmul.mubr.bf16.gmra.mrb[0].mxu0 %v1470
    %v1525 = vpop.f32.mrb[0].mxu0
    %v1526 = vadd.f32 0.0, %v1525
    %v1527 = vpop.f32.mrb[0].mxu0
    %v1528 = vpop.f32.mrb[0].mxu0
    %v1529 = vadd.f32 0.0, %v1528
    %v1530 = vpop.f32.mrb[0].mxu0
    %1531 = vmatprep.mubr.bf16.mxu0 0
    %1532 = vmatmul.mubr.bf16.gmra.mrb[0].mxu0 %v1473
    %v1533 = vpop.f32.mrb[0].mxu0
    %v1534 = vadd.f32 0.0, %v1533
    %v1535 = vpop.f32.mrb[0].mxu0
    %v1536 = vpop.f32.mrb[0].mxu0
    %v1537 = vadd.f32 0.0, %v1536
    %v1538 = vpop.f32.mrb[0].mxu0
    %1539 = vdwg.mxu0
    %v1540 = vpack.c.bf16 %v1513, %v1510
    %v1541 = vpack.c.bf16 %v1521, %v1518
    %v1542 = vpack.c.bf16 %v1529, %v1526
    %v1543 = vpack.c.bf16 %v1537, %v1534
    %v1544 = vpack.c.bf16 %v705, %v701
    %v1545 = vpack.c.bf16 %v715, %v711
    %v1546 = vpack.c.bf16 %v725, %v721
    %v1547 = vpack.c.bf16 %v735, %v731
    %s1548 = scalar_lea.vmem %s3, 96
    %v1549 = vld [vmem:[%s1548] sm:$0xf]
    %v1550 = vld [vmem:[%s1548 + $0x4] sm:$0xf]
    %v1551 = vld [vmem:[%s1548 + $0x8] sm:$0xf]
    %v1552 = vld [vmem:[%s1548 + $0xc] sm:$0xf]
    %v1553 = vld [vmem:[%s1548 + $0x10] sm:$0xf]
    %v1554 = vld [vmem:[%s1548 + $0x14] sm:$0xf]
    %v1555 = vld [vmem:[%s1548 + $0x18] sm:$0xf]
    %v1556 = vld [vmem:[%s1548 + $0x1c] sm:$0xf]
    %v1565 = vunpack.c.l.b16 %v1549
    %v1566 = vunpack.c.l.b16 %v1550
    %v1567 = vunpack.c.l.b16 %v1551
    %v1568 = vunpack.c.l.b16 %v1552
    %v1569 = vunpack.c.l.b16 %v1553
    %v1570 = vunpack.c.l.b16 %v1554
    %v1571 = vunpack.c.l.b16 %v1555
    %v1572 = vunpack.c.l.b16 %v1556
    %v1573 = vpack.c.b16 %v1566, %v1565
    %v1574 = vpack.c.b16 %v1568, %v1567
    %v1575 = vpack.c.b16 %v1570, %v1569
    %v1576 = vpack.c.b16 %v1572, %v1571
    %v1578 = vsel %vm179, %v1573, 0
    %v1581 = vsel %vm179, %v1574, 0
    %v1584 = vsel %vm179, %v1575, 0
    %v1587 = vsel %vm179, %v1576, 0
    %1589 = vmatprep.subr.bf16.mxu0 0
    %1590 = vmatpush1.bf16.msra.mxu0 %v1544
    %1591 = vmatprep.subr.bf16.mxu0 0
    %1592 = vmatpush1.bf16.msra.mxu0 %v1545
    %1593 = vmatprep.subr.bf16.mxu0 0
    %1594 = vmatpush1.bf16.msra.mxu0 %v1546
    %1595 = vmatprep.subr.bf16.mxu0 0
    %1596 = vmatpush1.bf16.msra.mxu0 %v1547
    %1597 = vmatprep.subr.bf16.mxu0 0
    %1598 = vmatpush1.bf16.msra.mxu0 0
    %1599 = vmatprep.subr.bf16.mxu0 0
    %1600 = vmatpush1.bf16.msra.mxu0 0
    %1601 = vmatprep.subr.bf16.mxu0 0
    %1602 = vmatpush1.bf16.msra.mxu0 0
    %1603 = vmatprep.subr.bf16.mxu0 0
    %1604 = vmatpush1.bf16.msra.mxu0 0
    %1605 = vmatprep.subr.bf16.mxu0 0
    %1606 = vmatpush1.bf16.msra.mxu0 0
    %1607 = vmatprep.subr.bf16.mxu0 0
    %1608 = vmatpush1.bf16.msra.mxu0 0
    %1609 = vmatprep.subr.bf16.mxu0 0
    %1610 = vmatpush1.bf16.msra.mxu0 0
    %1611 = vmatprep.subr.bf16.mxu0 0
    %1612 = vmatpush1.bf16.msra.mxu0 0
    %1613 = vmatprep.subr.bf16.mxu0 0
    %1614 = vmatpush1.bf16.msra.mxu0 0
    %1615 = vmatprep.subr.bf16.mxu0 0
    %1616 = vmatpush1.bf16.msra.mxu0 0
    %1617 = vmatprep.subr.bf16.mxu0 0
    %1618 = vmatpush1.bf16.msra.mxu0 0
    %1619 = vmatprep.subr.bf16.mxu0 0
    %1620 = vmatpush1.bf16.msra.mxu0 0
    %1621 = vmatprep.mubr.bf16.mxu0 0
    %1622 = vmatmul.mubr.bf16.gmra.mrb[0].mxu0 %v1578
    %v1623 = vpop.f32.mrb[0].mxu0
    %v1624 = vadd.f32 0.0, %v1623
    %v1625 = vpop.f32.mrb[0].mxu0
    %v1626 = vpop.f32.mrb[0].mxu0
    %v1627 = vadd.f32 0.0, %v1626
    %v1628 = vpop.f32.mrb[0].mxu0
    %1629 = vmatprep.mubr.bf16.mxu0 0
    %1630 = vmatmul.mubr.bf16.gmra.mrb[0].mxu0 %v1581
    %v1631 = vpop.f32.mrb[0].mxu0
    %v1632 = vadd.f32 0.0, %v1631
    %v1633 = vpop.f32.mrb[0].mxu0
    %v1634 = vpop.f32.mrb[0].mxu0
    %v1635 = vadd.f32 0.0, %v1634
    %v1636 = vpop.f32.mrb[0].mxu0
    %1637 = vmatprep.mubr.bf16.mxu0 0
    %1638 = vmatmul.mubr.bf16.gmra.mrb[0].mxu0 %v1584
    %v1639 = vpop.f32.mrb[0].mxu0
    %v1640 = vadd.f32 0.0, %v1639
    %v1641 = vpop.f32.mrb[0].mxu0
    %v1642 = vpop.f32.mrb[0].mxu0
    %v1643 = vadd.f32 0.0, %v1642
    %v1644 = vpop.f32.mrb[0].mxu0
    %1645 = vmatprep.mubr.bf16.mxu0 0
    %1646 = vmatmul.mubr.bf16.gmra.mrb[0].mxu0 %v1587
    %v1647 = vpop.f32.mrb[0].mxu0
    %v1648 = vadd.f32 0.0, %v1647
    %v1649 = vpop.f32.mrb[0].mxu0
    %v1650 = vpop.f32.mrb[0].mxu0
    %v1651 = vadd.f32 0.0, %v1650
    %v1652 = vpop.f32.mrb[0].mxu0
    %1653 = vdwg.mxu0
    %v1654 = vmax.f32 %v1624, -1.6666666
    %v1655 = vmax.f32 %v1627, -1.6666666
    %v1656 = vmax.f32 %v1632, -1.6666666
    %v1657 = vmax.f32 %v1635, -1.6666666
    %v1658 = vmax.f32 %v1640, -1.6666666
    %v1659 = vmax.f32 %v1643, -1.6666666
    %v1660 = vmax.f32 %v1648, -1.6666666
    %v1661 = vmax.f32 %v1651, -1.6666666
    %v1662 = vmin.f32 %v1654, 1.6666666
    %v1663 = vmin.f32 %v1655, 1.6666666
    %v1664 = vmin.f32 %v1656, 1.6666666
    %v1665 = vmin.f32 %v1657, 1.6666666
    %v1666 = vmin.f32 %v1658, 1.6666666
    %v1667 = vmin.f32 %v1659, 1.6666666
    %v1668 = vmin.f32 %v1660, 1.6666666
    %v1669 = vmin.f32 %v1661, 1.6666666
    %v1670 = vsub.f32 0.0, %v1662
    %v1671 = vsub.f32 0.0, %v1663
    %v1672 = vsub.f32 0.0, %v1664
    %v1673 = vsub.f32 0.0, %v1665
    %v1674 = vsub.f32 0.0, %v1666
    %v1675 = vsub.f32 0.0, %v1667
    %v1676 = vsub.f32 0.0, %v1668
    %v1677 = vsub.f32 0.0, %v1669
    %v1678 = vpack.c.bf16 %v1671, %v1670
    %v1679 = vpack.c.bf16 %v1673, %v1672
    %v1680 = vpack.c.bf16 %v1675, %v1674
    %v1681 = vpack.c.bf16 %v1677, %v1676
    %s1682 = scalar_lea.vmem %s4, 96
    %v1683 = vld [vmem:[%s1682] sm:$0xf]
    %v1684 = vld [vmem:[%s1682 + $0x4] sm:$0xf]
    %v1685 = vld [vmem:[%s1682 + $0x8] sm:$0xf]
    %v1686 = vld [vmem:[%s1682 + $0xc] sm:$0xf]
    %v1687 = vld [vmem:[%s1682 + $0x10] sm:$0xf]
    %v1688 = vld [vmem:[%s1682 + $0x14] sm:$0xf]
    %v1689 = vld [vmem:[%s1682 + $0x18] sm:$0xf]
    %v1690 = vld [vmem:[%s1682 + $0x1c] sm:$0xf]
    %v1699 = vunpack.c.l.b16 %v1683
    %v1700 = vunpack.c.l.b16 %v1684
    %v1701 = vunpack.c.l.b16 %v1685
    %v1702 = vunpack.c.l.b16 %v1686
    %v1703 = vunpack.c.l.b16 %v1687
    %v1704 = vunpack.c.l.b16 %v1688
    %v1705 = vunpack.c.l.b16 %v1689
    %v1706 = vunpack.c.l.b16 %v1690
    %v1707 = vpack.c.b16 %v1700, %v1699
    %v1708 = vpack.c.b16 %v1702, %v1701
    %v1709 = vpack.c.b16 %v1704, %v1703
    %v1710 = vpack.c.b16 %v1706, %v1705
    %v1712 = vsel %vm179, %v1707, 0
    %v1715 = vsel %vm179, %v1708, 0
    %v1718 = vsel %vm179, %v1709, 0
    %v1721 = vsel %vm179, %v1710, 0
    %1723 = vmatprep.subr.bf16.mxu0 0
    %1724 = vmatpush1.bf16.msra.mxu0 %v1678
    %1725 = vmatprep.subr.bf16.mxu0 0
    %1726 = vmatpush1.bf16.msra.mxu0 %v1679
    %1727 = vmatprep.subr.bf16.mxu0 0
    %1728 = vmatpush1.bf16.msra.mxu0 %v1680
    %1729 = vmatprep.subr.bf16.mxu0 0
    %1730 = vmatpush1.bf16.msra.mxu0 %v1681
    %1731 = vmatprep.subr.bf16.mxu0 0
    %1732 = vmatpush1.bf16.msra.mxu0 0
    %1733 = vmatprep.subr.bf16.mxu0 0
    %1734 = vmatpush1.bf16.msra.mxu0 0
    %1735 = vmatprep.subr.bf16.mxu0 0
    %1736 = vmatpush1.bf16.msra.mxu0 0
    %1737 = vmatprep.subr.bf16.mxu0 0
    %1738 = vmatpush1.bf16.msra.mxu0 0
    %1739 = vmatprep.subr.bf16.mxu0 0
    %1740 = vmatpush1.bf16.msra.mxu0 0
    %1741 = vmatprep.subr.bf16.mxu0 0
    %1742 = vmatpush1.bf16.msra.mxu0 0
    %1743 = vmatprep.subr.bf16.mxu0 0
    %1744 = vmatpush1.bf16.msra.mxu0 0
    %1745 = vmatprep.subr.bf16.mxu0 0
    %1746 = vmatpush1.bf16.msra.mxu0 0
    %1747 = vmatprep.subr.bf16.mxu0 0
    %1748 = vmatpush1.bf16.msra.mxu0 0
    %1749 = vmatprep.subr.bf16.mxu0 0
    %1750 = vmatpush1.bf16.msra.mxu0 0
    %1751 = vmatprep.subr.bf16.mxu0 0
    %1752 = vmatpush1.bf16.msra.mxu0 0
    %1753 = vmatprep.subr.bf16.mxu0 0
    %1754 = vmatpush1.bf16.msra.mxu0 0
    %1755 = vmatprep.mubr.bf16.mxu0 0
    %1756 = vmatmul.mubr.bf16.gmra.mrb[0].mxu0 %v1712
    %v1757 = vpop.f32.mrb[0].mxu0
    %v1758 = vadd.f32 0.0, %v1757
    %v1759 = vpop.f32.mrb[0].mxu0
    %v1760 = vpop.f32.mrb[0].mxu0
    %v1761 = vadd.f32 0.0, %v1760
    %v1762 = vpop.f32.mrb[0].mxu0
    %1763 = vmatprep.mubr.bf16.mxu0 0
    %1764 = vmatmul.mubr.bf16.gmra.mrb[0].mxu0 %v1715
    %v1765 = vpop.f32.mrb[0].mxu0
    %v1766 = vadd.f32 0.0, %v1765
    %v1767 = vpop.f32.mrb[0].mxu0
    %v1768 = vpop.f32.mrb[0].mxu0
    %v1769 = vadd.f32 0.0, %v1768
    %v1770 = vpop.f32.mrb[0].mxu0
    %1771 = vmatprep.mubr.bf16.mxu0 0
    %1772 = vmatmul.mubr.bf16.gmra.mrb[0].mxu0 %v1718
    %v1773 = vpop.f32.mrb[0].mxu0
    %v1774 = vadd.f32 0.0, %v1773
    %v1775 = vpop.f32.mrb[0].mxu0
    %v1776 = vpop.f32.mrb[0].mxu0
    %v1777 = vadd.f32 0.0, %v1776
    %v1778 = vpop.f32.mrb[0].mxu0
    %1779 = vmatprep.mubr.bf16.mxu0 0
    %1780 = vmatmul.mubr.bf16.gmra.mrb[0].mxu0 %v1721
    %v1781 = vpop.f32.mrb[0].mxu0
    %v1782 = vadd.f32 0.0, %v1781
    %v1783 = vpop.f32.mrb[0].mxu0
    %v1784 = vpop.f32.mrb[0].mxu0
    %v1785 = vadd.f32 0.0, %v1784
    %v1786 = vpop.f32.mrb[0].mxu0
    %1787 = vdwg.mxu0
    %v1788 = vpack.c.bf16 %v1761, %v1758
    %v1789 = vpack.c.bf16 %v1769, %v1766
    %v1790 = vpack.c.bf16 %v1777, %v1774
    %v1791 = vpack.c.bf16 %v1785, %v1782
    %v1792 = vpack.c.bf16 %v775, %v772
    %v1793 = vpack.c.bf16 %v783, %v780
    %v1794 = vpack.c.bf16 %v791, %v788
    %v1795 = vpack.c.bf16 %v799, %v796
    %s1796 = scalar_lea.vmem %s3, 128
    %v1797 = vld [vmem:[%s1796] sm:$0xf]
    %v1798 = vld [vmem:[%s1796 + $0x4] sm:$0xf]
    %v1799 = vld [vmem:[%s1796 + $0x8] sm:$0xf]
    %v1800 = vld [vmem:[%s1796 + $0xc] sm:$0xf]
    %v1801 = vld [vmem:[%s1796 + $0x10] sm:$0xf]
    %v1802 = vld [vmem:[%s1796 + $0x14] sm:$0xf]
    %v1803 = vld [vmem:[%s1796 + $0x18] sm:$0xf]
    %v1804 = vld [vmem:[%s1796 + $0x1c] sm:$0xf]
    %v1813 = vunpack.c.l.b16 %v1797
    %v1814 = vunpack.c.l.b16 %v1798
    %v1815 = vunpack.c.l.b16 %v1799
    %v1816 = vunpack.c.l.b16 %v1800
    %v1817 = vunpack.c.l.b16 %v1801
    %v1818 = vunpack.c.l.b16 %v1802
    %v1819 = vunpack.c.l.b16 %v1803
    %v1820 = vunpack.c.l.b16 %v1804
    %v1821 = vpack.c.b16 %v1814, %v1813
    %v1822 = vpack.c.b16 %v1816, %v1815
    %v1823 = vpack.c.b16 %v1818, %v1817
    %v1824 = vpack.c.b16 %v1820, %v1819
    %v1826 = vsel %vm179, %v1821, 0
    %v1829 = vsel %vm179, %v1822, 0
    %v1832 = vsel %vm179, %v1823, 0
    %v1835 = vsel %vm179, %v1824, 0
    %1837 = vmatprep.subr.bf16.mxu0 0
    %1838 = vmatpush1.bf16.msra.mxu0 %v1792
    %1839 = vmatprep.subr.bf16.mxu0 0
    %1840 = vmatpush1.bf16.msra.mxu0 %v1793
    %1841 = vmatprep.subr.bf16.mxu0 0
    %1842 = vmatpush1.bf16.msra.mxu0 %v1794
    %1843 = vmatprep.subr.bf16.mxu0 0
    %1844 = vmatpush1.bf16.msra.mxu0 %v1795
    %1845 = vmatprep.subr.bf16.mxu0 0
    %1846 = vmatpush1.bf16.msra.mxu0 0
    %1847 = vmatprep.subr.bf16.mxu0 0
    %1848 = vmatpush1.bf16.msra.mxu0 0
    %1849 = vmatprep.subr.bf16.mxu0 0
    %1850 = vmatpush1.bf16.msra.mxu0 0
    %1851 = vmatprep.subr.bf16.mxu0 0
    %1852 = vmatpush1.bf16.msra.mxu0 0
    %1853 = vmatprep.subr.bf16.mxu0 0
    %1854 = vmatpush1.bf16.msra.mxu0 0
    %1855 = vmatprep.subr.bf16.mxu0 0
    %1856 = vmatpush1.bf16.msra.mxu0 0
    %1857 = vmatprep.subr.bf16.mxu0 0
    %1858 = vmatpush1.bf16.msra.mxu0 0
    %1859 = vmatprep.subr.bf16.mxu0 0
    %1860 = vmatpush1.bf16.msra.mxu0 0
    %1861 = vmatprep.subr.bf16.mxu0 0
    %1862 = vmatpush1.bf16.msra.mxu0 0
    %1863 = vmatprep.subr.bf16.mxu0 0
    %1864 = vmatpush1.bf16.msra.mxu0 0
    %1865 = vmatprep.subr.bf16.mxu0 0
    %1866 = vmatpush1.bf16.msra.mxu0 0
    %1867 = vmatprep.subr.bf16.mxu0 0
    %1868 = vmatpush1.bf16.msra.mxu0 0
    %1869 = vmatprep.mubr.bf16.mxu0 0
    %1870 = vmatmul.mubr.bf16.gmra.mrb[0].mxu0 %v1826
    %v1871 = vpop.f32.mrb[0].mxu0
    %v1872 = vadd.f32 0.0, %v1871
    %v1873 = vpop.f32.mrb[0].mxu0
    %v1874 = vpop.f32.mrb[0].mxu0
    %v1875 = vadd.f32 0.0, %v1874
    %v1876 = vpop.f32.mrb[0].mxu0
    %1877 = vmatprep.mubr.bf16.mxu0 0
    %1878 = vmatmul.mubr.bf16.gmra.mrb[0].mxu0 %v1829
    %v1879 = vpop.f32.mrb[0].mxu0
    %v1880 = vadd.f32 0.0, %v1879
    %v1881 = vpop.f32.mrb[0].mxu0
    %v1882 = vpop.f32.mrb[0].mxu0
    %v1883 = vadd.f32 0.0, %v1882
    %v1884 = vpop.f32.mrb[0].mxu0
    %1885 = vmatprep.mubr.bf16.mxu0 0
    %1886 = vmatmul.mubr.bf16.gmra.mrb[0].mxu0 %v1832
    %v1887 = vpop.f32.mrb[0].mxu0
    %v1888 = vadd.f32 0.0, %v1887
    %v1889 = vpop.f32.mrb[0].mxu0
    %v1890 = vpop.f32.mrb[0].mxu0
    %v1891 = vadd.f32 0.0, %v1890
    %v1892 = vpop.f32.mrb[0].mxu0
    %1893 = vmatprep.mubr.bf16.mxu0 0
    %1894 = vmatmul.mubr.bf16.gmra.mrb[0].mxu0 %v1835
    %v1895 = vpop.f32.mrb[0].mxu0
    %v1896 = vadd.f32 0.0, %v1895
    %v1897 = vpop.f32.mrb[0].mxu0
    %v1898 = vpop.f32.mrb[0].mxu0
    %v1899 = vadd.f32 0.0, %v1898
    %v1900 = vpop.f32.mrb[0].mxu0
    %1901 = vdwg.mxu0
    %v1902 = vmax.f32 %v1872, -1.6666666
    %v1903 = vmax.f32 %v1875, -1.6666666
    %v1904 = vmax.f32 %v1880, -1.6666666
    %v1905 = vmax.f32 %v1883, -1.6666666
    %v1906 = vmax.f32 %v1888, -1.6666666
    %v1907 = vmax.f32 %v1891, -1.6666666
    %v1908 = vmax.f32 %v1896, -1.6666666
    %v1909 = vmax.f32 %v1899, -1.6666666
    %v1910 = vmin.f32 %v1902, 1.6666666
    %v1911 = vmin.f32 %v1903, 1.6666666
    %v1912 = vmin.f32 %v1904, 1.6666666
    %v1913 = vmin.f32 %v1905, 1.6666666
    %v1914 = vmin.f32 %v1906, 1.6666666
    %v1915 = vmin.f32 %v1907, 1.6666666
    %v1916 = vmin.f32 %v1908, 1.6666666
    %v1917 = vmin.f32 %v1909, 1.6666666
    %v1918 = vsub.f32 0.0, %v1910
    %v1919 = vsub.f32 0.0, %v1911
    %v1920 = vsub.f32 0.0, %v1912
    %v1921 = vsub.f32 0.0, %v1913
    %v1922 = vsub.f32 0.0, %v1914
    %v1923 = vsub.f32 0.0, %v1915
    %v1924 = vsub.f32 0.0, %v1916
    %v1925 = vsub.f32 0.0, %v1917
    %v1926 = vpack.c.bf16 %v1919, %v1918
    %v1927 = vpack.c.bf16 %v1921, %v1920
    %v1928 = vpack.c.bf16 %v1923, %v1922
    %v1929 = vpack.c.bf16 %v1925, %v1924
    %s1930 = scalar_lea.vmem %s4, 128
    %v1931 = vld [vmem:[%s1930] sm:$0xf]
    %v1932 = vld [vmem:[%s1930 + $0x4] sm:$0xf]
    %v1933 = vld [vmem:[%s1930 + $0x8] sm:$0xf]
    %v1934 = vld [vmem:[%s1930 + $0xc] sm:$0xf]
    %v1935 = vld [vmem:[%s1930 + $0x10] sm:$0xf]
    %v1936 = vld [vmem:[%s1930 + $0x14] sm:$0xf]
    %v1937 = vld [vmem:[%s1930 + $0x18] sm:$0xf]
    %v1938 = vld [vmem:[%s1930 + $0x1c] sm:$0xf]
    %v1947 = vunpack.c.l.b16 %v1931
    %v1948 = vunpack.c.l.b16 %v1932
    %v1949 = vunpack.c.l.b16 %v1933
    %v1950 = vunpack.c.l.b16 %v1934
    %v1951 = vunpack.c.l.b16 %v1935
    %v1952 = vunpack.c.l.b16 %v1936
    %v1953 = vunpack.c.l.b16 %v1937
    %v1954 = vunpack.c.l.b16 %v1938
    %v1955 = vpack.c.b16 %v1948, %v1947
    %v1956 = vpack.c.b16 %v1950, %v1949
    %v1957 = vpack.c.b16 %v1952, %v1951
    %v1958 = vpack.c.b16 %v1954, %v1953
    %v1960 = vsel %vm179, %v1955, 0
    %v1963 = vsel %vm179, %v1956, 0
    %v1966 = vsel %vm179, %v1957, 0
    %v1969 = vsel %vm179, %v1958, 0
    %1971 = vmatprep.subr.bf16.mxu0 0
    %1972 = vmatpush1.bf16.msra.mxu0 %v1926
    %1973 = vmatprep.subr.bf16.mxu0 0
    %1974 = vmatpush1.bf16.msra.mxu0 %v1927
    %1975 = vmatprep.subr.bf16.mxu0 0
    %1976 = vmatpush1.bf16.msra.mxu0 %v1928
    %1977 = vmatprep.subr.bf16.mxu0 0
    %1978 = vmatpush1.bf16.msra.mxu0 %v1929
    %1979 = vmatprep.subr.bf16.mxu0 0
    %1980 = vmatpush1.bf16.msra.mxu0 0
    %1981 = vmatprep.subr.bf16.mxu0 0
    %1982 = vmatpush1.bf16.msra.mxu0 0
    %1983 = vmatprep.subr.bf16.mxu0 0
    %1984 = vmatpush1.bf16.msra.mxu0 0
    %1985 = vmatprep.subr.bf16.mxu0 0
    %1986 = vmatpush1.bf16.msra.mxu0 0
    %1987 = vmatprep.subr.bf16.mxu0 0
    %1988 = vmatpush1.bf16.msra.mxu0 0
    %1989 = vmatprep.subr.bf16.mxu0 0
    %1990 = vmatpush1.bf16.msra.mxu0 0
    %1991 = vmatprep.subr.bf16.mxu0 0
    %1992 = vmatpush1.bf16.msra.mxu0 0
    %1993 = vmatprep.subr.bf16.mxu0 0
    %1994 = vmatpush1.bf16.msra.mxu0 0
    %1995 = vmatprep.subr.bf16.mxu0 0
    %1996 = vmatpush1.bf16.msra.mxu0 0
    %1997 = vmatprep.subr.bf16.mxu0 0
    %1998 = vmatpush1.bf16.msra.mxu0 0
    %1999 = vmatprep.subr.bf16.mxu0 0
    %2000 = vmatpush1.bf16.msra.mxu0 0
    %2001 = vmatprep.subr.bf16.mxu0 0
    %2002 = vmatpush1.bf16.msra.mxu0 0
    %2003 = vmatprep.mubr.bf16.mxu0 0
    %2004 = vmatmul.mubr.bf16.gmra.mrb[0].mxu0 %v1960
    %v2005 = vpop.f32.mrb[0].mxu0
    %v2006 = vadd.f32 0.0, %v2005
    %v2007 = vpop.f32.mrb[0].mxu0
    %v2008 = vpop.f32.mrb[0].mxu0
    %v2009 = vadd.f32 0.0, %v2008
    %v2010 = vpop.f32.mrb[0].mxu0
    %2011 = vmatprep.mubr.bf16.mxu0 0
    %2012 = vmatmul.mubr.bf16.gmra.mrb[0].mxu0 %v1963
    %v2013 = vpop.f32.mrb[0].mxu0
    %v2014 = vadd.f32 0.0, %v2013
    %v2015 = vpop.f32.mrb[0].mxu0
    %v2016 = vpop.f32.mrb[0].mxu0
    %v2017 = vadd.f32 0.0, %v2016
    %v2018 = vpop.f32.mrb[0].mxu0
    %2019 = vmatprep.mubr.bf16.mxu0 0
    %2020 = vmatmul.mubr.bf16.gmra.mrb[0].mxu0 %v1966
    %v2021 = vpop.f32.mrb[0].mxu0
    %v2022 = vadd.f32 0.0, %v2021
    %v2023 = vpop.f32.mrb[0].mxu0
    %v2024 = vpop.f32.mrb[0].mxu0
    %v2025 = vadd.f32 0.0, %v2024
    %v2026 = vpop.f32.mrb[0].mxu0
    %2027 = vmatprep.mubr.bf16.mxu0 0
    %2028 = vmatmul.mubr.bf16.gmra.mrb[0].mxu0 %v1969
    %v2029 = vpop.f32.mrb[0].mxu0
    %v2030 = vadd.f32 0.0, %v2029
    %v2031 = vpop.f32.mrb[0].mxu0
    %v2032 = vpop.f32.mrb[0].mxu0
    %v2033 = vadd.f32 0.0, %v2032
    %v2034 = vpop.f32.mrb[0].mxu0
    %2035 = vdwg.mxu0
    %v2036 = vpack.c.bf16 %v2009, %v2006
    %v2037 = vpack.c.bf16 %v2017, %v2014
    %v2038 = vpack.c.bf16 %v2025, %v2022
    %v2039 = vpack.c.bf16 %v2033, %v2030
    %v2040 = vld [vmem:[%s6] sm:$0xf]
    %v2041 = vld [vmem:[%s6 + $0x4] sm:$0xf]
    %v2042 = vld [vmem:[%s6 + $0x8] sm:$0xf]
    %v2043 = vld [vmem:[%s6 + $0xc] sm:$0xf]
    %v2044 = vld [vmem:[%s6 + $0x10] sm:$0xf]
    %v2045 = vld [vmem:[%s6 + $0x14] sm:$0xf]
    %v2046 = vld [vmem:[%s6 + $0x18] sm:$0xf]
    %v2047 = vld [vmem:[%s6 + $0x1c] sm:$0xf]
    %v2048 = vld [vmem:[%s6 + $0x20] sm:$0xf]
    %v2049 = vld [vmem:[%s6 + $0x24] sm:$0xf]
    %v2050 = vld [vmem:[%s6 + $0x28] sm:$0xf]
    %v2051 = vld [vmem:[%s6 + $0x2c] sm:$0xf]
    %v2052 = vld [vmem:[%s6 + $0x30] sm:$0xf]
    %v2053 = vld [vmem:[%s6 + $0x34] sm:$0xf]
    %v2054 = vld [vmem:[%s6 + $0x38] sm:$0xf]
    %v2055 = vld [vmem:[%s6 + $0x3c] sm:$0xf]
    %v2056 = vld [vmem:[%s6 + $0x40] sm:$0xf]
    %v2057 = vld [vmem:[%s6 + $0x44] sm:$0xf]
    %v2058 = vld [vmem:[%s6 + $0x48] sm:$0xf]
    %v2059 = vld [vmem:[%s6 + $0x4c] sm:$0xf]
    %v2060 = vld [vmem:[%s6 + $0x50] sm:$0xf]
    %v2061 = vld [vmem:[%s6 + $0x54] sm:$0xf]
    %v2062 = vld [vmem:[%s6 + $0x58] sm:$0xf]
    %v2063 = vld [vmem:[%s6 + $0x5c] sm:$0xf]
    %v2064 = vld [vmem:[%s6 + $0x60] sm:$0xf]
    %v2065 = vld [vmem:[%s6 + $0x64] sm:$0xf]
    %v2066 = vld [vmem:[%s6 + $0x68] sm:$0xf]
    %v2067 = vld [vmem:[%s6 + $0x6c] sm:$0xf]
    %v2068 = vld [vmem:[%s6 + $0x70] sm:$0xf]
    %v2069 = vld [vmem:[%s6 + $0x74] sm:$0xf]
    %v2070 = vld [vmem:[%s6 + $0x78] sm:$0xf]
    %v2071 = vld [vmem:[%s6 + $0x7c] sm:$0xf]
    %v2072 = vld [vmem:[%s6 + $0x80] sm:$0xf]
    %v2073 = vld [vmem:[%s6 + $0x84] sm:$0xf]
    %v2074 = vld [vmem:[%s6 + $0x88] sm:$0xf]
    %v2075 = vld [vmem:[%s6 + $0x8c] sm:$0xf]
    %v2076 = vld [vmem:[%s6 + $0x90] sm:$0xf]
    %v2077 = vld [vmem:[%s6 + $0x94] sm:$0xf]
    %v2078 = vld [vmem:[%s6 + $0x98] sm:$0xf]
    %v2079 = vld [vmem:[%s6 + $0x9c] sm:$0xf]
    %v2080 = vld [vmem:[%s6 + $0xa0] sm:$0xf]
    %v2081 = vld [vmem:[%s6 + $0xa4] sm:$0xf]
    %v2082 = vld [vmem:[%s6 + $0xa8] sm:$0xf]
    %v2083 = vld [vmem:[%s6 + $0xac] sm:$0xf]
    %v2084 = vld [vmem:[%s6 + $0xb0] sm:$0xf]
    %v2085 = vld [vmem:[%s6 + $0xb4] sm:$0xf]
    %v2086 = vld [vmem:[%s6 + $0xb8] sm:$0xf]
    %v2087 = vld [vmem:[%s6 + $0xbc] sm:$0xf]
    %v2088 = vld [vmem:[%s6 + $0xc0] sm:$0xf]
    %v2089 = vld [vmem:[%s6 + $0xc4] sm:$0xf]
    %v2090 = vld [vmem:[%s6 + $0xc8] sm:$0xf]
    %v2091 = vld [vmem:[%s6 + $0xcc] sm:$0xf]
    %v2092 = vld [vmem:[%s6 + $0xd0] sm:$0xf]
    %v2093 = vld [vmem:[%s6 + $0xd4] sm:$0xf]
    %v2094 = vld [vmem:[%s6 + $0xd8] sm:$0xf]
    %v2095 = vld [vmem:[%s6 + $0xdc] sm:$0xf]
    %v2096 = vld [vmem:[%s6 + $0xe0] sm:$0xf]
    %v2097 = vld [vmem:[%s6 + $0xe4] sm:$0xf]
    %v2098 = vld [vmem:[%s6 + $0xe8] sm:$0xf]
    %v2099 = vld [vmem:[%s6 + $0xec] sm:$0xf]
    %v2100 = vld [vmem:[%s6 + $0xf0] sm:$0xf]
    %v2101 = vld [vmem:[%s6 + $0xf4] sm:$0xf]
    %v2102 = vld [vmem:[%s6 + $0xf8] sm:$0xf]
    %v2103 = vld [vmem:[%s6 + $0xfc] sm:$0xf]
    %v2104 = vld [vmem:[%s6 + $0x100] sm:$0xf]
    %v2105 = vld [vmem:[%s6 + $0x104] sm:$0xf]
    %v2106 = vld [vmem:[%s6 + $0x108] sm:$0xf]
    %v2107 = vld [vmem:[%s6 + $0x10c] sm:$0xf]
    %v2108 = vld [vmem:[%s6 + $0x110] sm:$0xf]
    %v2109 = vld [vmem:[%s6 + $0x114] sm:$0xf]
    %v2110 = vld [vmem:[%s6 + $0x118] sm:$0xf]
    %v2111 = vld [vmem:[%s6 + $0x11c] sm:$0xf]
    %v2112 = vld [vmem:[%s6 + $0x120] sm:$0xf]
    %v2113 = vld [vmem:[%s6 + $0x124] sm:$0xf]
    %v2114 = vld [vmem:[%s6 + $0x128] sm:$0xf]
    %v2115 = vld [vmem:[%s6 + $0x12c] sm:$0xf]
    %v2116 = vld [vmem:[%s6 + $0x130] sm:$0xf]
    %v2117 = vld [vmem:[%s6 + $0x134] sm:$0xf]
    %v2118 = vld [vmem:[%s6 + $0x138] sm:$0xf]
    %v2119 = vld [vmem:[%s6 + $0x13c] sm:$0xf]
    %v2200 = vunpack.c.l.b16 %v2040
    %v2201 = vunpack.c.l.b16 %v2041
    %v2202 = vunpack.c.l.b16 %v2042
    %v2203 = vunpack.c.l.b16 %v2043
    %v2204 = vunpack.c.l.b16 %v2044
    %v2205 = vunpack.c.l.b16 %v2045
    %v2206 = vunpack.c.l.b16 %v2046
    %v2207 = vunpack.c.l.b16 %v2047
    %v2208 = vunpack.c.l.b16 %v2048
    %v2209 = vunpack.c.l.b16 %v2049
    %v2210 = vunpack.c.l.b16 %v2050
    %v2211 = vunpack.c.l.b16 %v2051
    %v2212 = vunpack.c.l.b16 %v2052
    %v2213 = vunpack.c.l.b16 %v2053
    %v2214 = vunpack.c.l.b16 %v2054
    %v2215 = vunpack.c.l.b16 %v2055
    %v2216 = vunpack.c.l.b16 %v2056
    %v2217 = vunpack.c.l.b16 %v2057
    %v2218 = vunpack.c.l.b16 %v2058
    %v2219 = vunpack.c.l.b16 %v2059
    %v2220 = vunpack.c.l.b16 %v2060
    %v2221 = vunpack.c.l.b16 %v2061
    %v2222 = vunpack.c.l.b16 %v2062
    %v2223 = vunpack.c.l.b16 %v2063
    %v2224 = vunpack.c.l.b16 %v2064
    %v2225 = vunpack.c.l.b16 %v2065
    %v2226 = vunpack.c.l.b16 %v2066
    %v2227 = vunpack.c.l.b16 %v2067
    %v2228 = vunpack.c.l.b16 %v2068
    %v2229 = vunpack.c.l.b16 %v2069
    %v2230 = vunpack.c.l.b16 %v2070
    %v2231 = vunpack.c.l.b16 %v2071
    %v2232 = vunpack.c.l.b16 %v2072
    %v2233 = vunpack.c.l.b16 %v2073
    %v2234 = vunpack.c.l.b16 %v2074
    %v2235 = vunpack.c.l.b16 %v2075
    %v2236 = vunpack.c.l.b16 %v2076
    %v2237 = vunpack.c.l.b16 %v2077
    %v2238 = vunpack.c.l.b16 %v2078
    %v2239 = vunpack.c.l.b16 %v2079
    %v2240 = vunpack.c.l.b16 %v2080
    %v2241 = vunpack.c.l.b16 %v2081
    %v2242 = vunpack.c.l.b16 %v2082
    %v2243 = vunpack.c.l.b16 %v2083
    %v2244 = vunpack.c.l.b16 %v2084
    %v2245 = vunpack.c.l.b16 %v2085
    %v2246 = vunpack.c.l.b16 %v2086
    %v2247 = vunpack.c.l.b16 %v2087
    %v2248 = vunpack.c.l.b16 %v2088
    %v2249 = vunpack.c.l.b16 %v2089
    %v2250 = vunpack.c.l.b16 %v2090
    %v2251 = vunpack.c.l.b16 %v2091
    %v2252 = vunpack.c.l.b16 %v2092
    %v2253 = vunpack.c.l.b16 %v2093
    %v2254 = vunpack.c.l.b16 %v2094
    %v2255 = vunpack.c.l.b16 %v2095
    %v2256 = vunpack.c.l.b16 %v2096
    %v2257 = vunpack.c.l.b16 %v2097
    %v2258 = vunpack.c.l.b16 %v2098
    %v2259 = vunpack.c.l.b16 %v2099
    %v2260 = vunpack.c.l.b16 %v2100
    %v2261 = vunpack.c.l.b16 %v2101
    %v2262 = vunpack.c.l.b16 %v2102
    %v2263 = vunpack.c.l.b16 %v2103
    %v2264 = vunpack.c.l.b16 %v2104
    %v2265 = vunpack.c.l.b16 %v2105
    %v2266 = vunpack.c.l.b16 %v2106
    %v2267 = vunpack.c.l.b16 %v2107
    %v2268 = vunpack.c.l.b16 %v2108
    %v2269 = vunpack.c.l.b16 %v2109
    %v2270 = vunpack.c.l.b16 %v2110
    %v2271 = vunpack.c.l.b16 %v2111
    %v2272 = vunpack.c.l.b16 %v2112
    %v2273 = vunpack.c.l.b16 %v2113
    %v2274 = vunpack.c.l.b16 %v2114
    %v2275 = vunpack.c.l.b16 %v2115
    %v2276 = vunpack.c.l.b16 %v2116
    %v2277 = vunpack.c.l.b16 %v2117
    %v2278 = vunpack.c.l.b16 %v2118
    %v2279 = vunpack.c.l.b16 %v2119
    %v2280 = vpack.c.b16 %v2201, %v2200
    %v2281 = vpack.c.b16 %v2203, %v2202
    %v2282 = vpack.c.b16 %v2205, %v2204
    %v2283 = vpack.c.b16 %v2207, %v2206
    %v2284 = vpack.c.b16 %v2209, %v2208
    %v2285 = vpack.c.b16 %v2211, %v2210
    %v2286 = vpack.c.b16 %v2213, %v2212
    %v2287 = vpack.c.b16 %v2215, %v2214
    %v2288 = vpack.c.b16 %v2217, %v2216
    %v2289 = vpack.c.b16 %v2219, %v2218
    %v2290 = vpack.c.b16 %v2221, %v2220
    %v2291 = vpack.c.b16 %v2223, %v2222
    %v2292 = vpack.c.b16 %v2225, %v2224
    %v2293 = vpack.c.b16 %v2227, %v2226
    %v2294 = vpack.c.b16 %v2229, %v2228
    %v2295 = vpack.c.b16 %v2231, %v2230
    %v2296 = vpack.c.b16 %v2233, %v2232
    %v2297 = vpack.c.b16 %v2235, %v2234
    %v2298 = vpack.c.b16 %v2237, %v2236
    %v2299 = vpack.c.b16 %v2239, %v2238
    %v2300 = vpack.c.b16 %v2241, %v2240
    %v2301 = vpack.c.b16 %v2243, %v2242
    %v2302 = vpack.c.b16 %v2245, %v2244
    %v2303 = vpack.c.b16 %v2247, %v2246
    %v2304 = vpack.c.b16 %v2249, %v2248
    %v2305 = vpack.c.b16 %v2251, %v2250
    %v2306 = vpack.c.b16 %v2253, %v2252
    %v2307 = vpack.c.b16 %v2255, %v2254
    %v2308 = vpack.c.b16 %v2257, %v2256
    %v2309 = vpack.c.b16 %v2259, %v2258
    %v2310 = vpack.c.b16 %v2261, %v2260
    %v2311 = vpack.c.b16 %v2263, %v2262
    %v2312 = vpack.c.b16 %v2265, %v2264
    %v2313 = vpack.c.b16 %v2267, %v2266
    %v2314 = vpack.c.b16 %v2269, %v2268
    %v2315 = vpack.c.b16 %v2271, %v2270
    %v2316 = vpack.c.b16 %v2273, %v2272
    %v2317 = vpack.c.b16 %v2275, %v2274
    %v2318 = vpack.c.b16 %v2277, %v2276
    %v2319 = vpack.c.b16 %v2279, %v2278
    %2360 = vmatprep.subr.bf16.mxu0 0
    %2361 = vmatpush1.bf16.msra.mxu0 %v2280
    %2362 = vmatprep.subr.bf16.mxu0 0
    %2363 = vmatpush1.bf16.msra.mxu0 %v2281
    %2364 = vmatprep.subr.bf16.mxu0 0
    %2365 = vmatpush1.bf16.msra.mxu0 %v2282
    %2366 = vmatprep.subr.bf16.mxu0 0
    %2367 = vmatpush1.bf16.msra.mxu0 %v2283
    %2368 = vmatprep.subr.bf16.mxu0 0
    %2369 = vmatpush1.bf16.msra.mxu0 %v2284
    %2370 = vmatprep.subr.bf16.mxu0 0
    %2371 = vmatpush1.bf16.msra.mxu0 %v2285
    %2372 = vmatprep.subr.bf16.mxu0 0
    %2373 = vmatpush1.bf16.msra.mxu0 %v2286
    %2374 = vmatprep.subr.bf16.mxu0 0
    %2375 = vmatpush1.bf16.msra.mxu0 %v2287
    %2376 = vmatprep.subr.bf16.mxu0 0
    %2377 = vmatpush1.bf16.msra.mxu0 %v2288
    %2378 = vmatprep.subr.bf16.mxu0 0
    %2379 = vmatpush1.bf16.msra.mxu0 %v2289
    %2380 = vmatprep.subr.bf16.mxu0 0
    %2381 = vmatpush1.bf16.msra.mxu0 %v2290
    %2382 = vmatprep.subr.bf16.mxu0 0
    %2383 = vmatpush1.bf16.msra.mxu0 %v2291
    %2384 = vmatprep.subr.bf16.mxu0 0
    %2385 = vmatpush1.bf16.msra.mxu0 %v2292
    %2386 = vmatprep.subr.bf16.mxu0 0
    %2387 = vmatpush1.bf16.msra.mxu0 %v2293
    %2388 = vmatprep.subr.bf16.mxu0 0
    %2389 = vmatpush1.bf16.msra.mxu0 %v2294
    %2390 = vmatprep.subr.bf16.mxu0 0
    %2391 = vmatpush1.bf16.msra.mxu0 %v2295
    %2392 = vmatprep.mubr.bf16.mxu0 %v1292
    %2393 = vmatmul.mubr.bf16.gmra.mrb[0].mxu0 %v1044
    %v2394 = vpop.f32.mrb[0].mxu0
    %v2395 = vadd.f32 0.0, %v2394
    %v2396 = vpop.f32.mrb[0].mxu0
    %v2397 = vpop.f32.mrb[0].mxu0
    %v2398 = vadd.f32 0.0, %v2397
    %v2399 = vpop.f32.mrb[0].mxu0
    %2400 = vmatprep.mubr.bf16.mxu0 %v1293
    %2401 = vmatmul.mubr.bf16.gmra.mrb[0].mxu0 %v1045
    %v2402 = vpop.f32.mrb[0].mxu0
    %v2403 = vadd.f32 0.0, %v2402
    %v2404 = vpop.f32.mrb[0].mxu0
    %v2405 = vpop.f32.mrb[0].mxu0
    %v2406 = vadd.f32 0.0, %v2405
    %v2407 = vpop.f32.mrb[0].mxu0
    %2408 = vmatprep.mubr.bf16.mxu0 %v1294
    %2409 = vmatmul.mubr.bf16.gmra.mrb[0].mxu0 %v1046
    %v2410 = vpop.f32.mrb[0].mxu0
    %v2411 = vadd.f32 0.0, %v2410
    %v2412 = vpop.f32.mrb[0].mxu0
    %v2413 = vpop.f32.mrb[0].mxu0
    %v2414 = vadd.f32 0.0, %v2413
    %v2415 = vpop.f32.mrb[0].mxu0
    %2416 = vmatprep.mubr.bf16.mxu0 %v1295
    %2417 = vmatmul.mubr.bf16.gmra.mrb[0].mxu0 %v1047
    %v2418 = vpop.f32.mrb[0].mxu0
    %v2419 = vadd.f32 0.0, %v2418
    %v2420 = vpop.f32.mrb[0].mxu0
    %v2421 = vpop.f32.mrb[0].mxu0
    %v2422 = vadd.f32 0.0, %v2421
    %v2423 = vpop.f32.mrb[0].mxu0
    %2424 = vdwg.mxu0
    %2425 = vmatprep.subr.bf16.mxu0 0
    %2426 = vmatpush1.bf16.msra.mxu0 %v2296
    %2427 = vmatprep.subr.bf16.mxu0 0
    %2428 = vmatpush1.bf16.msra.mxu0 %v2297
    %2429 = vmatprep.subr.bf16.mxu0 0
    %2430 = vmatpush1.bf16.msra.mxu0 %v2298
    %2431 = vmatprep.subr.bf16.mxu0 0
    %2432 = vmatpush1.bf16.msra.mxu0 %v2299
    %2433 = vmatprep.subr.bf16.mxu0 0
    %2434 = vmatpush1.bf16.msra.mxu0 %v2300
    %2435 = vmatprep.subr.bf16.mxu0 0
    %2436 = vmatpush1.bf16.msra.mxu0 %v2301
    %2437 = vmatprep.subr.bf16.mxu0 0
    %2438 = vmatpush1.bf16.msra.mxu0 %v2302
    %2439 = vmatprep.subr.bf16.mxu0 0
    %2440 = vmatpush1.bf16.msra.mxu0 %v2303
    %2441 = vmatprep.subr.bf16.mxu0 0
    %2442 = vmatpush1.bf16.msra.mxu0 %v2304
    %2443 = vmatprep.subr.bf16.mxu0 0
    %2444 = vmatpush1.bf16.msra.mxu0 %v2305
    %2445 = vmatprep.subr.bf16.mxu0 0
    %2446 = vmatpush1.bf16.msra.mxu0 %v2306
    %2447 = vmatprep.subr.bf16.mxu0 0
    %2448 = vmatpush1.bf16.msra.mxu0 %v2307
    %2449 = vmatprep.subr.bf16.mxu0 0
    %2450 = vmatpush1.bf16.msra.mxu0 %v2308
    %2451 = vmatprep.subr.bf16.mxu0 0
    %2452 = vmatpush1.bf16.msra.mxu0 %v2309
    %2453 = vmatprep.subr.bf16.mxu0 0
    %2454 = vmatpush1.bf16.msra.mxu0 %v2310
    %2455 = vmatprep.subr.bf16.mxu0 0
    %2456 = vmatpush1.bf16.msra.mxu0 %v2311
    %2457 = vmatprep.mubr.bf16.mxu0 %v1788
    %2458 = vmatmul.mubr.bf16.gmra.mrb[0].mxu0 %v1540
    %v2459 = vpop.f32.mrb[0].mxu0
    %v2460 = vadd.f32 %v2395, %v2459
    %v2461 = vpop.f32.mrb[0].mxu0
    %v2462 = vpop.f32.mrb[0].mxu0
    %v2463 = vadd.f32 %v2398, %v2462
    %v2464 = vpop.f32.mrb[0].mxu0
    %2465 = vmatprep.mubr.bf16.mxu0 %v1789
    %2466 = vmatmul.mubr.bf16.gmra.mrb[0].mxu0 %v1541
    %v2467 = vpop.f32.mrb[0].mxu0
    %v2468 = vadd.f32 %v2403, %v2467
    %v2469 = vpop.f32.mrb[0].mxu0
    %v2470 = vpop.f32.mrb[0].mxu0
    %v2471 = vadd.f32 %v2406, %v2470
    %v2472 = vpop.f32.mrb[0].mxu0
    %2473 = vmatprep.mubr.bf16.mxu0 %v1790
    %2474 = vmatmul.mubr.bf16.gmra.mrb[0].mxu0 %v1542
    %v2475 = vpop.f32.mrb[0].mxu0
    %v2476 = vadd.f32 %v2411, %v2475
    %v2477 = vpop.f32.mrb[0].mxu0
    %v2478 = vpop.f32.mrb[0].mxu0
    %v2479 = vadd.f32 %v2414, %v2478
    %v2480 = vpop.f32.mrb[0].mxu0
    %2481 = vmatprep.mubr.bf16.mxu0 %v1791
    %2482 = vmatmul.mubr.bf16.gmra.mrb[0].mxu0 %v1543
    %v2483 = vpop.f32.mrb[0].mxu0
    %v2484 = vadd.f32 %v2419, %v2483
    %v2485 = vpop.f32.mrb[0].mxu0
    %v2486 = vpop.f32.mrb[0].mxu0
    %v2487 = vadd.f32 %v2422, %v2486
    %v2488 = vpop.f32.mrb[0].mxu0
    %2489 = vdwg.mxu0
    %2490 = vmatprep.subr.bf16.mxu0 0
    %2491 = vmatpush1.bf16.msra.mxu0 %v2312
    %2492 = vmatprep.subr.bf16.mxu0 0
    %2493 = vmatpush1.bf16.msra.mxu0 %v2313
    %2494 = vmatprep.subr.bf16.mxu0 0
    %2495 = vmatpush1.bf16.msra.mxu0 %v2314
    %2496 = vmatprep.subr.bf16.mxu0 0
    %2497 = vmatpush1.bf16.msra.mxu0 %v2315
    %2498 = vmatprep.subr.bf16.mxu0 0
    %2499 = vmatpush1.bf16.msra.mxu0 %v2316
    %2500 = vmatprep.subr.bf16.mxu0 0
    %2501 = vmatpush1.bf16.msra.mxu0 %v2317
    %2502 = vmatprep.subr.bf16.mxu0 0
    %2503 = vmatpush1.bf16.msra.mxu0 %v2318
    %2504 = vmatprep.subr.bf16.mxu0 0
    %2505 = vmatpush1.bf16.msra.mxu0 %v2319
    %2506 = vmatprep.subr.bf16.mxu0 0
    %2507 = vmatpush1.bf16.msra.mxu0 0
    %2508 = vmatprep.subr.bf16.mxu0 0
    %2509 = vmatpush1.bf16.msra.mxu0 0
    %2510 = vmatprep.subr.bf16.mxu0 0
    %2511 = vmatpush1.bf16.msra.mxu0 0
    %2512 = vmatprep.subr.bf16.mxu0 0
    %2513 = vmatpush1.bf16.msra.mxu0 0
    %2514 = vmatprep.subr.bf16.mxu0 0
    %2515 = vmatpush1.bf16.msra.mxu0 0
    %2516 = vmatprep.subr.bf16.mxu0 0
    %2517 = vmatpush1.bf16.msra.mxu0 0
    %2518 = vmatprep.subr.bf16.mxu0 0
    %2519 = vmatpush1.bf16.msra.mxu0 0
    %2520 = vmatprep.subr.bf16.mxu0 0
    %2521 = vmatpush1.bf16.msra.mxu0 0
    %2522 = vmatprep.mubr.bf16.mxu0 0
    %2523 = vmatmul.mubr.bf16.gmra.mrb[0].mxu0 %v2036
    %v2524 = vpop.f32.mrb[0].mxu0
    %v2525 = vadd.f32 %v2460, %v2524
    %v2526 = vpop.f32.mrb[0].mxu0
    %v2527 = vpop.f32.mrb[0].mxu0
    %v2528 = vadd.f32 %v2463, %v2527
    %v2529 = vpop.f32.mrb[0].mxu0
    %2530 = vmatprep.mubr.bf16.mxu0 0
    %2531 = vmatmul.mubr.bf16.gmra.mrb[0].mxu0 %v2037
    %v2532 = vpop.f32.mrb[0].mxu0
    %v2533 = vadd.f32 %v2468, %v2532
    %v2534 = vpop.f32.mrb[0].mxu0
    %v2535 = vpop.f32.mrb[0].mxu0
    %v2536 = vadd.f32 %v2471, %v2535
    %v2537 = vpop.f32.mrb[0].mxu0
    %2538 = vmatprep.mubr.bf16.mxu0 0
    %2539 = vmatmul.mubr.bf16.gmra.mrb[0].mxu0 %v2038
    %v2540 = vpop.f32.mrb[0].mxu0
    %v2541 = vadd.f32 %v2476, %v2540
    %v2542 = vpop.f32.mrb[0].mxu0
    %v2543 = vpop.f32.mrb[0].mxu0
    %v2544 = vadd.f32 %v2479, %v2543
    %v2545 = vpop.f32.mrb[0].mxu0
    %2546 = vmatprep.mubr.bf16.mxu0 0
    %2547 = vmatmul.mubr.bf16.gmra.mrb[0].mxu0 %v2039
    %v2548 = vpop.f32.mrb[0].mxu0
    %v2549 = vadd.f32 %v2484, %v2548
    %v2550 = vpop.f32.mrb[0].mxu0
    %v2551 = vpop.f32.mrb[0].mxu0
    %v2552 = vadd.f32 %v2487, %v2551
    %v2553 = vpop.f32.mrb[0].mxu0
    %2554 = vdwg.mxu0
    %v2555 = vadd.f32 %v323, %v2525
    %v2556 = vadd.f32 %v324, %v2528
    %v2557 = vadd.f32 %v325, %v2533
    %v2558 = vadd.f32 %v326, %v2536
    %v2559 = vadd.f32 %v327, %v2541
    %v2560 = vadd.f32 %v328, %v2544
    %v2561 = vadd.f32 %v329, %v2549
    %v2562 = vadd.f32 %v330, %v2552
  $region34: #{sr_model_forward.1} parent=0 // loop_footer
    %s314 = sadd.s32 1, %s310
  $region35: #{sr_model_forward.1} parent=0 // loop_footer_branch
    %309 = sbr.rel target = $region31
  $region36: #{sr_model_forward.1} parent=0 // loop_exit
    _
  %2563 = vst [vmem:[%s7] sm:$0xff] %v315
  %2564 = vst [vmem:[%s7 + $0x8] sm:$0xff] %v316
  %2565 = vst [vmem:[%s7 + $0x10] sm:$0xff] %v317
  %2566 = vst [vmem:[%s7 + $0x18] sm:$0xff] %v318
  %2567 = vst [vmem:[%s7 + $0x20] sm:$0xff] %v319
  %2568 = vst [vmem:[%s7 + $0x28] sm:$0xff] %v320
  %2569 = vst [vmem:[%s7 + $0x30] sm:$0xff] %v321
  %2570 = vst [vmem:[%s7 + $0x38] sm:$0xff] %v322
  %2571 = vst [vmem:[%s8] sm:$0xff] %v323
  %2572 = vst [vmem:[%s8 + $0x8] sm:$0xff] %v324
  %2573 = vst [vmem:[%s8 + $0x10] sm:$0xff] %v325
  %2574 = vst [vmem:[%s8 + $0x18] sm:$0xff] %v326
  %2575 = vst [vmem:[%s8 + $0x20] sm:$0xff] %v327
  %2576 = vst [vmem:[%s8 + $0x28] sm:$0xff] %v328
  %2577 = vst [vmem:[%s8 + $0x30] sm:$0xff] %v329
  %2578 = vst [vmem:[%s8 + $0x38] sm:$0xff] %v330
  // Predicated region
  $region37: #{sr_model_forward.1} parent=0 // pred_check
    _
  $region38: #{sr_model_forward.1} parent=0 // pred_check_branch
    %2580 = sbr.rel (0) target = $region40
  $region39: #{sr_model_forward.1} parent=0 // pred_region
    _
  $region40: #{sr_model_forward.1} parent=0 // pred_fallthru
    _
  // Predicated region
  $region41: #{sr_model_forward.1} parent=0 // pred_check
    _
  $region42: #{sr_model_forward.1} parent=0 // pred_check_branch
    %2582 = sbr.rel (0) target = $region44
  $region43: #{sr_model_forward.1} parent=0 // pred_region
    _
  $region44: #{sr_model_forward.1} parent=0 // pred_fallthru
    _
  // Predicated region
  $region45: #{sr_model_forward.1} parent=0 // pred_check
    _
  $region46: #{sr_model_forward.1} parent=0 // pred_check_branch
    %2584 = sbr.rel (0) target = $region48
  $region47: #{sr_model_forward.1} parent=0 // pred_region
    _
  $region48: #{sr_model_forward.1} parent=0 // pred_fallthru
    _
  // Predicated region
  $region49: #{sr_model_forward.1} parent=0 // pred_check
    _
  $region50: #{sr_model_forward.1} parent=0 // pred_check_branch
    %2586 = sbr.rel (0) target = $region52
  $region51: #{sr_model_forward.1} parent=0 // pred_region
    _
  $region52: #{sr_model_forward.1} parent=0 // pred_fallthru
    _

</llo_original>
